<compile_context>
chip_gen: v6e
topology: v6e:2x2x1
jax: 0.10.0
libtpu: 0.0.40
codegen_flags: <defaults>
</compile_context>

<pallas_src>
import functools
import numpy as np
import jax
import jax.numpy as jnp
from jax.experimental import pallas as pl
from jax.experimental.pallas import tpu as pltpu


# ----------------------------------------------------------------------------
# Deterministic parameter init: cv2.getGaussianKernel replica (no cv2 import).
# ----------------------------------------------------------------------------
_CV2_SMALL_GAUSSIAN = {
    1: np.array([1.0]),
    3: np.array([0.25, 0.5, 0.25]),
    5: np.array([0.0625, 0.25, 0.375, 0.25, 0.0625]),
    7: np.array([0.03125, 0.109375, 0.21875, 0.28125, 0.21875, 0.109375, 0.03125]),
}


def get_gaussian_kernel_1d(ksize: int, sigma: float) -> np.ndarray:
    """Matches cv2.getGaussianKernel(ksize, sigma) for odd ksize."""
    if sigma <= 0 and ksize in _CV2_SMALL_GAUSSIAN:
        return _CV2_SMALL_GAUSSIAN[ksize].astype(np.float64)
    sigma_x = sigma if sigma > 0 else 0.3 * ((ksize - 1) * 0.5 - 1) + 0.8
    xs = np.arange(ksize, dtype=np.float64) - (ksize - 1) * 0.5
    k = np.exp(-(xs * xs) / (2.0 * sigma_x * sigma_x))
    return k / k.sum()


def _reflect_index(i: int, n: int) -> int:
    """Index map of F.pad(mode='reflect') (mirror without edge repeat)."""
    if n == 1:
        return 0
    period = 2 * (n - 1)
    i = i % period
    return i if i < n else period - i


def _reflect_blur_matrix(n: int, n_pad: int, k1d: np.ndarray) -> np.ndarray:
    """(n_pad, n_pad) operator whose row i<n is the reflect-padded 1D Gaussian at i.

    Left-multiplying an (n_pad, m) block by this matrix performs the 1D Gaussian
    blur with reflect padding along that axis.  Rows/cols >= n are zero, so
    zero-padded (layout-only) rows stay zero and never contaminate the interior.
    """
    p = len(k1d) // 2
    m = np.zeros((n_pad, n_pad), dtype=np.float32)
    for i in range(n):
        for t, wgt in enumerate(k1d):
            m[i, _reflect_index(i + t - p, n)] += np.float32(wgt)
    return m


def _round_up(x: int, m: int) -> int:
    return (x + m - 1) // m * m


# ----------------------------------------------------------------------------
# Fused Pallas kernel: blur -> residual -> mask -> blur(mask) -> clip -> blend.
# ----------------------------------------------------------------------------
def _usm_fused_kernel(bv_ref, bht_ref, img_ref, out_ref, *, weight, threshold):
    x = img_ref[...]          # (Hp, Wp) f32, one (batch, channel) plane
    bv = bv_ref[...]          # (Hp, Hp)  vertical reflect-pad + blur operator
    bht = bht_ref[...]        # (Wp, Wp)  horizontal operator, pre-transposed
    hi = jax.lax.Precision.HIGHEST

    def blur(z):
        # Separable Gaussian with reflect padding, as two MXU matmuls.
        zh = jnp.dot(z, bht, precision=hi, preferred_element_type=jnp.float32)
        return jnp.dot(bv, zh, precision=hi, preferred_element_type=jnp.float32)

    blur_img = blur(x)
    residual = x - blur_img
    mask = (jnp.abs(residual) * 255.0 > threshold).astype(jnp.float32)
    soft = blur(mask)                                   # mask never leaves VMEM
    sharp = jnp.clip(x + weight * residual, 0.0, 1.0)
    out_ref[...] = soft * sharp + (1.0 - soft) * x


# ----------------------------------------------------------------------------
# Wrapper
# ----------------------------------------------------------------------------
def usm_sharp(img, radius=5, sigma=0.0, weight=0.5, threshold=10.0):
    """USMSharp.forward(img, weight, threshold) with a (radius x radius) Gaussian.

    img: (b, c, h, w) float, values typically in [0, 1].
    radius must satisfy radius//2 < h, w (same reflect-pad constraint as PyTorch).
    """
    if radius % 2 == 0:
        radius += 1
    p = radius // 2
    img = img.astype(jnp.float32)
    b, c, h, w = img.shape
    if p >= h or p >= w:
        raise ValueError("reflect padding requires radius // 2 < h and < w")

    k1d = get_gaussian_kernel_1d(radius, sigma)
    hp = _round_up(h, 8)                 # sublane multiple
    wp = _round_up(w, 128)               # lane multiple -> lane-dense stores
    bv = jnp.asarray(_reflect_blur_matrix(h, hp, k1d))          # (hp, hp)
    bht = jnp.asarray(_reflect_blur_matrix(w, wp, k1d).T)       # (wp, wp)

    x = img.reshape(b * c, h, w)
    if hp != h or wp != w:
        x = jnp.pad(x, ((0, 0), (0, hp - h), (0, wp - w)))      # zero layout pad

    # Explicit VMEM budget: double-buffered img/out blocks + resident operator
    # matrices + headroom; clamped to be safe on v7x (64 MiB) and v5e/v6e.
    block_bytes = 4 * (4 * hp * wp + 2 * hp * hp + 2 * wp * wp)
    vmem_limit = int(min(max(4 * block_bytes + (8 << 20), 32 << 20), 48 << 20))

    out = pl.pallas_call(
        functools.partial(_usm_fused_kernel,
                          weight=float(weight), threshold=float(threshold)),
        grid=(b * c,),
        in_specs=[
            pl.BlockSpec((hp, hp), lambda i: (0, 0)),    # Bv   (block idx constant -> stays resident)
            pl.BlockSpec((wp, wp), lambda i: (0, 0)),    # Bh^T (stays resident)
            pl.BlockSpec((pl.Squeezed(), hp, wp), lambda i: (i, 0, 0)),
        ],
        out_specs=pl.BlockSpec((pl.Squeezed(), hp, wp), lambda i: (i, 0, 0)),
        out_shape=jax.ShapeDtypeStruct((b * c, hp, wp), jnp.float32),
        compiler_params=pltpu.CompilerParams(
            dimension_semantics=("parallel",),
            vmem_limit_bytes=vmem_limit,
        ),
    )(bv, bht, x)

    return out[:, :h, :w].reshape(b, c, h, w)


# ----------------------------------------------------------------------------
# Pure-JAX references for verification.
# ----------------------------------------------------------------------------
def _filter2d_padconv_ref(x, kern2d, p):
    """Faithful to the PyTorch filter2D: reflect pad + dense k x k conv."""
    xp = jnp.pad(x, ((0, 0), (0, 0), (p, p), (p, p)), mode="reflect")
    k = kern2d.shape[-1]
    h, w = x.shape[-2], x.shape[-1]
    out = jnp.zeros_like(x)
    for dy in range(k):
        for dx in range(k):
            out = out + kern2d[dy, dx] * xp[:, :, dy:dy + h, dx:dx + w]
    return out


def _filter2d_mat_ref(x, bv, bht):
    """Matrix form used by the kernel (full f32 precision)."""
    hi = jax.lax.Precision.HIGHEST
    zh = jnp.einsum("bchw,wv->bchv", x, bht, precision=hi)
    return jnp.einsum("hk,bckv->bchv", bv, zh, precision=hi)


def usm_sharp_mat_ref(img, bv, bht, weight=0.5, threshold=10.0):
    img = img.astype(jnp.float32)
    blur = _filter2d_mat_ref(img, bv, bht)
    residual = img - blur
    mask = (jnp.abs(residual) * 255.0 > threshold).astype(jnp.float32)
    soft = _filter2d_mat_ref(mask, bv, bht)
    sharp = jnp.clip(img + weight * residual, 0.0, 1.0)
    return soft * sharp + (1.0 - soft) * img


# ----------------------------------------------------------------------------
if __name__ == "__main__":
    key = jax.random.PRNGKey(0)
    b, c, h, w = 2, 4, 16, 16
    radius, sigma, weight, threshold = 5, 0.0, 0.5, 10.0
    img = jax.random.uniform(key, (b, c, h, w), dtype=jnp.float32)

    out = jax.block_until_ready(usm_sharp(img, radius, sigma, weight, threshold))

    # --- Verification -------------------------------------------------------
    p = radius // 2
    k1d = get_gaussian_kernel_1d(radius, sigma)
    kern2d = jnp.asarray(np.outer(k1d, k1d), dtype=jnp.float32)
    bv = jnp.asarray(_reflect_blur_matrix(h, h, k1d))
    bht = jnp.asarray(_reflect_blur_matrix(w, w, k1d).T)

    # (a) The reflect-pad blur operators reproduce the module's filter2D blur.
    blur_mod = jax.block_until_ready(_filter2d_padconv_ref(img, kern2d, p))
    blur_mat = jax.block_until_ready(_filter2d_mat_ref(img, bv, bht))
    np.testing.assert_allclose(np.asarray(blur_mat), np.asarray(blur_mod),
                               rtol=1e-5, atol=1e-5)

    # (b) The fused Pallas kernel matches the pure-JAX pipeline built from the
    #     same operators.  (The end-to-end check uses the matrix blur because
    #     the hard threshold would amplify benign fp-reordering differences.)
    ref = jax.block_until_ready(usm_sharp_mat_ref(img, bv, bht, weight, threshold))
    np.testing.assert_allclose(np.asarray(out), np.asarray(ref),
                               rtol=1e-5, atol=1e-5)

    print("KERNEL_OK")
</pallas_src>

<mosaic_0001>
module attributes {stable_mosaic.version = 11 : i64} {
  func.func @_usm_fused_kernel(%arg0: i32, %arg1: memref<16x16xf32, #tpu.memory_space<vmem>>, %arg2: memref<128x128xf32, #tpu.memory_space<vmem>>, %arg3: memref<1x16x128xf32, #tpu.memory_space<vmem>>, %arg4: memref<1x16x128xf32, #tpu.memory_space<vmem>>) attributes {dimension_semantics = [#tpu.dimension_semantics<parallel>], iteration_bounds = array<i64: 8>, scalar_prefetch = 0 : i64, scratch_operands = 0 : i64, tpu.core_type = #tpu.core_type<tc>, window_params = [{pipeline_mode = #tpu.pipeline_mode<synchronous>, transform_indices = @transform_0, window_bounds = array<i64: 16, 16>}, {pipeline_mode = #tpu.pipeline_mode<synchronous>, transform_indices = @transform_1, window_bounds = array<i64: 128, 128>}, {transform_indices = @transform_2, window_bounds = array<i64: 1, 16, 128>}, {transform_indices = @transform_3, window_bounds = array<i64: 1, 16, 128>}]} {
    %c0 = arith.constant 0 : index
    %c0_0 = arith.constant 0 : index
    %c0_1 = arith.constant 0 : index
    %0 = vector.load %arg3[%c0, %c0_0, %c0_1] : memref<1x16x128xf32, #tpu.memory_space<vmem>>, vector<1x16x128xf32>
    %1 = vector.shape_cast %0 : vector<1x16x128xf32> to vector<16x128xf32>
    %c0_2 = arith.constant 0 : index
    %c0_3 = arith.constant 0 : index
    %2 = vector.load %arg1[%c0_2, %c0_3] : memref<16x16xf32, #tpu.memory_space<vmem>>, vector<16x16xf32>
    %c0_4 = arith.constant 0 : index
    %c0_5 = arith.constant 0 : index
    %3 = vector.load %arg2[%c0_4, %c0_5] : memref<128x128xf32, #tpu.memory_space<vmem>>, vector<128x128xf32>
    %cst = arith.constant dense<0.000000e+00> : vector<16x128xf32>
    %4 = tpu.matmul %1, %3, %cst {dimension_numbers = #tpu.dot_dimension_numbers<[1], [0], [0], [1], [0, 0, 1, 1], [], []>, precision = #tpu.contract_precision<fp32>} : vector<16x128xf32>, vector<128x128xf32>, vector<16x128xf32> -> vector<16x128xf32>
    %cst_6 = arith.constant dense<0.000000e+00> : vector<16x128xf32>
    %5 = tpu.matmul %2, %4, %cst_6 {dimension_numbers = #tpu.dot_dimension_numbers<[1], [0], [0], [1], [0, 0, 1, 1], [], []>, precision = #tpu.contract_precision<fp32>} : vector<16x16xf32>, vector<16x128xf32>, vector<16x128xf32> -> vector<16x128xf32>
    %6 = arith.subf %1, %5 : vector<16x128xf32>
    %7 = math.absf %6 : vector<16x128xf32>
    %cst_7 = arith.constant 2.550000e+02 : f32
    %8 = vector.broadcast %cst_7 : f32 to vector<16x128xf32>
    %9 = arith.mulf %7, %8 : vector<16x128xf32>
    %cst_8 = arith.constant 1.000000e+01 : f32
    %10 = vector.broadcast %cst_8 : f32 to vector<16x128xf32>
    %11 = arith.cmpf ogt, %9, %10 : vector<16x128xf32>
    %12 = arith.extui %11 : vector<16x128xi1> to vector<16x128xi32>
    %13 = arith.sitofp %12 : vector<16x128xi32> to vector<16x128xf32>
    %cst_9 = arith.constant dense<0.000000e+00> : vector<16x128xf32>
    %14 = tpu.matmul %13, %3, %cst_9 {dimension_numbers = #tpu.dot_dimension_numbers<[1], [0], [0], [1], [0, 0, 1, 1], [], []>, precision = #tpu.contract_precision<fp32>} : vector<16x128xf32>, vector<128x128xf32>, vector<16x128xf32> -> vector<16x128xf32>
    %cst_10 = arith.constant dense<0.000000e+00> : vector<16x128xf32>
    %15 = tpu.matmul %2, %14, %cst_10 {dimension_numbers = #tpu.dot_dimension_numbers<[1], [0], [0], [1], [0, 0, 1, 1], [], []>, precision = #tpu.contract_precision<fp32>} : vector<16x16xf32>, vector<16x128xf32>, vector<16x128xf32> -> vector<16x128xf32>
    %cst_11 = arith.constant 5.000000e-01 : f32
    %16 = vector.broadcast %cst_11 : f32 to vector<16x128xf32>
    %17 = arith.mulf %16, %6 : vector<16x128xf32>
    %18 = arith.addf %1, %17 : vector<16x128xf32>
    %cst_12 = arith.constant 0.000000e+00 : f32
    %cst_13 = arith.constant 1.000000e+00 : f32
    %19 = vector.broadcast %cst_12 : f32 to vector<16x128xf32>
    %20 = arith.maximumf %19, %18 : vector<16x128xf32>
    %21 = vector.broadcast %cst_13 : f32 to vector<16x128xf32>
    %22 = arith.minimumf %21, %20 : vector<16x128xf32>
    %23 = arith.mulf %15, %22 : vector<16x128xf32>
    %cst_14 = arith.constant 1.000000e+00 : f32
    %24 = vector.broadcast %cst_14 : f32 to vector<16x128xf32>
    %25 = arith.subf %24, %15 : vector<16x128xf32>
    %26 = arith.mulf %25, %1 : vector<16x128xf32>
    %27 = arith.addf %23, %26 : vector<16x128xf32>
    %c0_15 = arith.constant 0 : index
    %c0_16 = arith.constant 0 : index
    %c0_17 = arith.constant 0 : index
    %28 = vector.load %arg4[%c0_15, %c0_16, %c0_17] : memref<1x16x128xf32, #tpu.memory_space<vmem>>, vector<1x16x128xf32>
    %29 = vector.shape_cast %28 : vector<1x16x128xf32> to vector<16x128xf32>
    %30 = vector.shape_cast %27 : vector<16x128xf32> to vector<1x16x128xf32>
    tpu.vector_store %arg4[%c0_15, %c0_16, %c0_17], %30 {strides = array<i32>} : memref<1x16x128xf32, #tpu.memory_space<vmem>>, vector<1x16x128xf32>,
    return
  }
  func.func @transform_0(%arg0: i32) -> (i32, i32) {
    %c0_i32 = arith.constant 0 : i32
    %c0_i32_0 = arith.constant 0 : i32
    %c0_i32_1 = arith.constant 0 : i32
    return %c0_i32, %c0_i32_0 : i32, i32
  }
  func.func @transform_1(%arg0: i32) -> (i32, i32) {
    %c0_i32 = arith.constant 0 : i32
    %c0_i32_0 = arith.constant 0 : i32
    %c0_i32_1 = arith.constant 0 : i32
    return %c0_i32, %c0_i32_0 : i32, i32
  }
  func.func @transform_2(%arg0: i32) -> (i32, i32, i32) {
    %c0_i32 = arith.constant 0 : i32
    %c0_i32_0 = arith.constant 0 : i32
    %c0_i32_1 = arith.constant 0 : i32
    return %arg0, %c0_i32, %c0_i32_0 : i32, i32, i32
  }
  func.func @transform_3(%arg0: i32) -> (i32, i32, i32) {
    %c0_i32 = arith.constant 0 : i32
    %c0_i32_0 = arith.constant 0 : i32
    %c0_i32_1 = arith.constant 0 : i32
    return %arg0, %c0_i32, %c0_i32_0 : i32, i32, i32
  }
}

</mosaic_0001>

<llo_original>
// kernel: tpu_custom_call.1
$region0: #{tpu_custom_call.1}
  #allocation0 [shape = 'u32[]', space=smem, size = 0x4, offset = 0x4, fixed_abs, tag = 'smem constant byte address 0x4 - core index']
  #allocation1 [shape = 'u32[144,128]{1,0:T(1,128)}', space=vmem, size = 0x12000, scoped, tag = 'internal scratch']
  %s0 = inlined_call_operand.hbm [shape: f32[16,16], index: 0, kind: input, shape index: {}]
  %s1 = inlined_call_operand.hbm [shape: f32[128,128], index: 1, kind: input, shape index: {}]
  %s2 = inlined_call_operand.hbm [shape: f32[8,16,128], index: 2, kind: input, shape index: {}]
  %s3 = inlined_call_operand.hbm [shape: f32[8,16,128], index: 3, kind: output, shape index: {}]
  %s4 = sld [smem:[#allocation0]]
  $region57: #{tpu_custom_call.1} parent=0
    _
  %s6 = ssub.s32 1, %s4
  %s7 = scalar_select 0, %s6, %s4
  $region1: #{tpu_custom_call.1} parent=0
    #allocation2 [shape = 'u8[8192]{0}', space=vmem, size = 0x2000, scoped, tag = 'input window, operand 0, single buffered']
    #allocation3 [shape = 's32[2]{0}', space=sflag, size = 0x8, scoped, tag = 'scoped memory for tpu_custom_call.1']
    #allocation4 [shape = 's32[2]{0}', space=sflag, size = 0x8, scoped, tag = 'scoped memory for tpu_custom_call.1']
    #allocation5 [shape = 'u8[65536]{0}', space=vmem, size = 0x10000, scoped, tag = 'input window, operand 1, single buffered']
    #allocation6 [shape = 's32[1]{0}', space=sflag, size = 0x4, scoped, tag = 'scoped memory for tpu_custom_call.1']
    #allocation7 [shape = 'u8[16384]{0}', space=vmem, size = 0x4000, scoped, tag = 'input window, operand 2']
    #allocation8 [shape = 'u8[16384]{0}', space=vmem, size = 0x4000, scoped, tag = 'output window, operand 0']
    %8 = vsyncpa [#allocation3], 0
    %9 = vsyncpa [#allocation6], 0
    %10 = vsyncpa [#allocation4], 0
    %s11 = scalar_lea.sflag [#allocation4], 1
    %12 = vsyncpa %s11, 0
    loop: start=0, step=1, limit=10
    $region2: #{tpu_custom_call.1} parent=1 // loop_pre_header
      _
    $region3: #{tpu_custom_call.1} parent=1 // loop_header
      %s14 = sphi 0, %s18
      %p15 = scmp.ge.s32.totalorder %s14, 10
      %s22 = sphi 0, %s22
      %s24 = sphi 0, %s22
      %s25 = sphi 0, %s24
      %s39 = sphi 0, %s25
      %s43 = sphi 0, %s43
      %s45 = sphi 0, %s43
      %s46 = sphi 0, %s45
      %s60 = sphi 0, %s46
      %s66 = sphi 0, %s68
      %s69 = sphi 0, %s66
      %s70 = sphi 0, %s69
      %s86 = sphi 0, %s70
      %s92 = sphi 0, %s94
      %s95 = sphi 0, %s92
      %s96 = sphi 0, %s95
      %s112 = sphi 0, %s96
    $region4: #{tpu_custom_call.1} parent=1 // loop_header_branch
      %17 = sbr.rel (%p15) target = $region8
    $region5: #{tpu_custom_call.1} parent=1 // loop_body
      %s19 = ssub.s32 %s14, 1
      %s20 = ssub.s32 %s14, 2
      %s21 = sadd.s32 %s14, 1
      %s23 = sadd.s32 %s22, 1
      %p26 = scmp.eq.s32.totalorder %s14, 7
      %p27 = scmp.ne.s32.totalorder %s22, %s24
      %p28 = scmp.eq.s32.totalorder %s14, 0
      %p29 = por %p27, %p28
      %p30 = scmp.ne.s32.totalorder %s22, %s24
      %p31 = scmp.eq.s32.totalorder %s19, 7
      %p32 = por %p30, %p31
      %p33 = scmp.ne.s32.totalorder %s24, %s25
      %p34 = scmp.eq.s32.totalorder %s19, 0
      %p35 = por %p33, %p34
      %p36 = scmp.ne.s32.totalorder %s24, %s25
      %p37 = scmp.eq.s32.totalorder %s20, 7
      %p38 = por %p36, %p37
      %p40 = scmp.ne.s32.totalorder %s25, %s39
      %p41 = scmp.eq.s32.totalorder %s20, 0
      %p42 = por %p40, %p41
      %s44 = sadd.s32 %s43, 1
      %p47 = scmp.eq.s32.totalorder %s14, 7
      %p48 = scmp.ne.s32.totalorder %s43, %s45
      %p49 = scmp.eq.s32.totalorder %s14, 0
      %p50 = por %p48, %p49
      %p51 = scmp.ne.s32.totalorder %s43, %s45
      %p52 = scmp.eq.s32.totalorder %s19, 7
      %p53 = por %p51, %p52
      %p54 = scmp.ne.s32.totalorder %s45, %s46
      %p55 = scmp.eq.s32.totalorder %s19, 0
      %p56 = por %p54, %p55
      %p57 = scmp.ne.s32.totalorder %s45, %s46
      %p58 = scmp.eq.s32.totalorder %s20, 7
      %p59 = por %p57, %p58
      %p61 = scmp.ne.s32.totalorder %s46, %s60
      %p62 = scmp.eq.s32.totalorder %s20, 0
      %p63 = por %p61, %p62
      %s64 = ssub.s32 %s14, %s21
      %p65 = scmp.eq.s32.totalorder %s64, 0
      %s67 = sadd.s32 %s66, 1
      %s68 = scalar_select %p65, %s66, %s67
      %p71 = pneg %p65
      %p72 = scmp.eq.s32.totalorder %s14, 7
      %p73 = por %p71, %p72
      %p74 = scmp.ne.s32.totalorder %s66, %s69
      %p75 = scmp.eq.s32.totalorder %s14, 0
      %p76 = por %p74, %p75
      %p77 = scmp.ne.s32.totalorder %s66, %s69
      %p78 = scmp.eq.s32.totalorder %s19, 7
      %p79 = por %p77, %p78
      %p80 = scmp.ne.s32.totalorder %s69, %s70
      %p81 = scmp.eq.s32.totalorder %s19, 0
      %p82 = por %p80, %p81
      %p83 = scmp.ne.s32.totalorder %s69, %s70
      %p84 = scmp.eq.s32.totalorder %s20, 7
      %p85 = por %p83, %p84
      %p87 = scmp.ne.s32.totalorder %s70, %s86
      %p88 = scmp.eq.s32.totalorder %s20, 0
      %p89 = por %p87, %p88
      %s90 = ssub.s32 %s14, %s21
      %p91 = scmp.eq.s32.totalorder %s90, 0
      %s93 = sadd.s32 %s92, 1
      %s94 = scalar_select %p91, %s92, %s93
      %p97 = pneg %p91
      %p98 = scmp.eq.s32.totalorder %s14, 7
      %p99 = por %p97, %p98
      %p100 = scmp.ne.s32.totalorder %s92, %s95
      %p101 = scmp.eq.s32.totalorder %s14, 0
      %p102 = por %p100, %p101
      %p103 = scmp.ne.s32.totalorder %s92, %s95
      %p104 = scmp.eq.s32.totalorder %s19, 7
      %p105 = por %p103, %p104
      %p106 = scmp.ne.s32.totalorder %s95, %s96
      %p107 = scmp.eq.s32.totalorder %s19, 0
      %p108 = por %p106, %p107
      %p109 = scmp.ne.s32.totalorder %s95, %s96
      %p110 = scmp.eq.s32.totalorder %s20, 7
      %p111 = por %p109, %p110
      %p113 = scmp.ne.s32.totalorder %s96, %s112
      %p114 = scmp.eq.s32.totalorder %s20, 0
      %p115 = por %p113, %p114
      %p116 = scmp.le.s32.totalorder 1, %s14
      %p117 = scmp.lt.s32.totalorder %s14, 9
      %p118 = pnand %p116, %p117
      %p119 = pneg %p118
      // Predicated region
      $region9: #{tpu_custom_call.1} parent=5 // pred_check
        _
      $region10: #{tpu_custom_call.1} parent=5 // pred_check_branch
        %121 = sbr.rel (%p118) target = $region12
      $region11: #{tpu_custom_call.1} parent=5 // pred_region
        %s122 = ssub.s32 %s14, 1
        // Predicated region
        $region13: #{tpu_custom_call.1} parent=11 // pred_check
          %p123 = pneg %p35
        $region14: #{tpu_custom_call.1} parent=11 // pred_check_branch
          %125 = sbr.rel (%p123) target = $region16
        $region15: #{tpu_custom_call.1} parent=11 // pred_region
          %s127 = ssub.s32 256, 256
          %128 = vsyncadd [#allocation3], %s127
          %s129 = sshll.u32 [#allocation2], 4
          %s130 = int_to_ptr.vmem [resolvable:$true] %s129
          %135 = dma.hbm_to_vmem [thread:$0]  %s0, 256, %s130, [#allocation3], 128, 128, 8
        $region16: #{tpu_custom_call.1} parent=11 // pred_fallthru
          _
        // Predicated region
        $region17: #{tpu_custom_call.1} parent=11 // pred_check
          %p136 = pneg %p56
        $region18: #{tpu_custom_call.1} parent=11 // pred_check_branch
          %138 = sbr.rel (%p136) target = $region20
        $region19: #{tpu_custom_call.1} parent=11 // pred_region
          %s140 = ssub.s32 2048, 2048
          %141 = vsyncadd [#allocation6], %s140
          %s142 = sshll.u32 [#allocation5], 4
          %s143 = int_to_ptr.vmem [resolvable:$true] %s142
          %148 = dma.hbm_to_vmem [thread:$0]  %s1, 2048, %s143, [#allocation6], 128, 128, 8
        $region20: #{tpu_custom_call.1} parent=11 // pred_fallthru
          _
      $region12: #{tpu_custom_call.1} parent=5 // pred_fallthru
        _
      %p149 = scmp.lt.s32.totalorder %s14, 8
      // Predicated region
      $region21: #{tpu_custom_call.1} parent=5 // pred_check
        %p150 = pneg %p149
      $region22: #{tpu_custom_call.1} parent=5 // pred_check_branch
        %152 = sbr.rel (%p150) target = $region24
      $region23: #{tpu_custom_call.1} parent=5 // pred_region
        // Predicated region
        $region25: #{tpu_custom_call.1} parent=23 // pred_check
          %p153 = pneg %p76
        $region26: #{tpu_custom_call.1} parent=23 // pred_check_branch
          %155 = sbr.rel (%p153) target = $region28
        $region27: #{tpu_custom_call.1} parent=23 // pred_region
          %s156 = sand.u32 %s14, 1
          %s157 = scalar_lea.sflag [#allocation3], %s156
          %s158 = sand.u32 %s66, 1
          %s159 = smul.addr %s158, 16
          %s160 = scalar_lea.vmem [#allocation7], %s159
          %s162 = ssub.s32 256, 256
          %163 = vsyncadd %s157, %s162
          %s164 = smul.addr %s14, 2
          %s165 = smul.addr %s164, 128
          %s166 = scalar_lea.hbm %s2, %s165
          %s167 = sshll.u32 %s160, 4
          %s168 = int_to_ptr.vmem [resolvable:$true] %s167
          %173 = dma.hbm_to_vmem [thread:$0]  %s166, 256, %s168, %s157, 128, 128, 8
        $region28: #{tpu_custom_call.1} parent=23 // pred_fallthru
          _
      $region24: #{tpu_custom_call.1} parent=5 // pred_fallthru
        _
      %p174 = scmp.le.s32.totalorder 1, %s14
      %p175 = scmp.lt.s32.totalorder %s14, 9
      %p176 = pnand %p174, %p175
      %p177 = pneg %p176
      // Predicated region
      $region29: #{tpu_custom_call.1} parent=5 // pred_check
        _
      $region30: #{tpu_custom_call.1} parent=5 // pred_check_branch
        %179 = sbr.rel (%p176) target = $region32
      $region31: #{tpu_custom_call.1} parent=5 // pred_region
        %s180 = ssub.s32 %s14, 1
        // Predicated region
        $region33: #{tpu_custom_call.1} parent=31 // pred_check
          %p181 = pneg %p35
        $region34: #{tpu_custom_call.1} parent=31 // pred_check_branch
          %183 = sbr.rel (%p181) target = $region36
        $region35: #{tpu_custom_call.1} parent=31 // pred_region
          %184 = dma.done [#allocation3], 256
        $region36: #{tpu_custom_call.1} parent=31 // pred_fallthru
          _
        // Predicated region
        $region37: #{tpu_custom_call.1} parent=31 // pred_check
          %p185 = pneg %p56
        $region38: #{tpu_custom_call.1} parent=31 // pred_check_branch
          %187 = sbr.rel (%p185) target = $region40
        $region39: #{tpu_custom_call.1} parent=31 // pred_region
          %188 = dma.done [#allocation6], 2048
        $region40: #{tpu_custom_call.1} parent=31 // pred_fallthru
          _
        %s189 = sand.u32 %s19, 1
        %s190 = scalar_lea.sflag [#allocation3], %s189
        %s191 = sand.u32 %s69, 1
        %s192 = smul.addr %s191, 16
        %s193 = scalar_lea.vmem [#allocation7], %s192
        // Predicated region
        $region41: #{tpu_custom_call.1} parent=31 // pred_check
          %p194 = pneg %p82
        $region42: #{tpu_custom_call.1} parent=31 // pred_check_branch
          %196 = sbr.rel (%p194) target = $region44
        $region43: #{tpu_custom_call.1} parent=31 // pred_region
          %197 = dma.done %s190, 256
        $region44: #{tpu_custom_call.1} parent=31 // pred_fallthru
          _
        %p198 = pneg %p35
        %p199 = pneg %p32
        %p200 = pneg %p56
        %p201 = pneg %p53
        %s202 = sand.u32 %s19, 1
        %s203 = scalar_lea.sflag [#allocation3], %s202
        %s204 = sand.u32 %s69, 1
        %s205 = smul.addr %s204, 16
        %s206 = scalar_lea.vmem [#allocation7], %s205
        %p207 = pneg %p82
        %p208 = pneg %p79
        %p209 = pneg %p108
        %p210 = pneg %p105
        %s211 = sand.u32 %s95, 1
        %s212 = scalar_lea.sflag [#allocation4], %s211
        %s213 = sand.u32 %s95, 1
        %s214 = smul.addr %s213, 16
        %s215 = scalar_lea.vmem [#allocation8], %s214
        %v216 = vld [vmem:[%s193] sm:$0xff]
        %v217 = vld [vmem:[%s193 + $0x8] sm:$0xff]
        %v218 = vld [vmem:[#allocation2] sm:$0xff]
        %v219 = vld [vmem:[#allocation2 + $0x8] sm:$0xff]
        %v220 = vld [vmem:[#allocation5] sm:$0xff]
        %v221 = vld [vmem:[#allocation5 + $0x8] sm:$0xff]
        %v222 = vld [vmem:[#allocation5 + $0x10] sm:$0xff]
        %v223 = vld [vmem:[#allocation5 + $0x18] sm:$0xff]
        %v224 = vld [vmem:[#allocation5 + $0x20] sm:$0xff]
        %v225 = vld [vmem:[#allocation5 + $0x28] sm:$0xff]
        %v226 = vld [vmem:[#allocation5 + $0x30] sm:$0xff]
        %v227 = vld [vmem:[#allocation5 + $0x38] sm:$0xff]
        %v228 = vld [vmem:[#allocation5 + $0x40] sm:$0xff]
        %v229 = vld [vmem:[#allocation5 + $0x48] sm:$0xff]
        %v230 = vld [vmem:[#allocation5 + $0x50] sm:$0xff]
        %v231 = vld [vmem:[#allocation5 + $0x58] sm:$0xff]
        %v232 = vld [vmem:[#allocation5 + $0x60] sm:$0xff]
        %v233 = vld [vmem:[#allocation5 + $0x68] sm:$0xff]
        %v234 = vld [vmem:[#allocation5 + $0x70] sm:$0xff]
        %v235 = vld [vmem:[#allocation5 + $0x78] sm:$0xff]
        %236 = vmatprep.subr.mxu0 0.0
        %v237 = vand.u32 %v235, 4294901760
        %238 = vmatpush1.msra.mxu0 %v237
        %239 = vmatprep.subr.mxu0 0.0
        %v240 = vand.u32 %v234, 4294901760
        %241 = vmatpush1.msra.mxu0 %v240
        %242 = vmatprep.subr.mxu0 0.0
        %v243 = vand.u32 %v233, 4294901760
        %244 = vmatpush1.msra.mxu0 %v243
        %245 = vmatprep.subr.mxu0 0.0
        %v246 = vand.u32 %v232, 4294901760
        %247 = vmatpush1.msra.mxu0 %v246
        %248 = vmatprep.subr.mxu0 0.0
        %v249 = vand.u32 %v231, 4294901760
        %250 = vmatpush1.msra.mxu0 %v249
        %251 = vmatprep.subr.mxu0 0.0
        %v252 = vand.u32 %v230, 4294901760
        %253 = vmatpush1.msra.mxu0 %v252
        %254 = vmatprep.subr.mxu0 0.0
        %v255 = vand.u32 %v229, 4294901760
        %256 = vmatpush1.msra.mxu0 %v255
        %257 = vmatprep.subr.mxu0 0.0
        %v258 = vand.u32 %v228, 4294901760
        %259 = vmatpush1.msra.mxu0 %v258
        %260 = vmatprep.subr.mxu0 0.0
        %v261 = vand.u32 %v227, 4294901760
        %262 = vmatpush1.msra.mxu0 %v261
        %263 = vmatprep.subr.mxu0 0.0
        %v264 = vand.u32 %v226, 4294901760
        %265 = vmatpush1.msra.mxu0 %v264
        %266 = vmatprep.subr.mxu0 0.0
        %v267 = vand.u32 %v225, 4294901760
        %268 = vmatpush1.msra.mxu0 %v267
        %269 = vmatprep.subr.mxu0 0.0
        %v270 = vand.u32 %v224, 4294901760
        %271 = vmatpush1.msra.mxu0 %v270
        %272 = vmatprep.subr.mxu0 0.0
        %v273 = vand.u32 %v223, 4294901760
        %274 = vmatpush1.msra.mxu0 %v273
        %275 = vmatprep.subr.mxu0 0.0
        %v276 = vand.u32 %v222, 4294901760
        %277 = vmatpush1.msra.mxu0 %v276
        %278 = vmatprep.subr.mxu0 0.0
        %v279 = vand.u32 %v221, 4294901760
        %280 = vmatpush1.msra.mxu0 %v279
        %281 = vmatprep.subr.mxu0 0.0
        %v282 = vand.u32 %v220, 4294901760
        %283 = vmatpush1.msra.mxu0 %v282
        %284 = vmatprep.subr.mxu0 0.0
        %285 = vmatpush2.msra.mxu0 0.0
        %286 = vmatprep.subr.mxu0 0.0
        %287 = vmatpush2.msra.mxu0 0.0
        %288 = vmatprep.subr.mxu0 0.0
        %289 = vmatpush2.msra.mxu0 0.0
        %290 = vmatprep.subr.mxu0 0.0
        %291 = vmatpush2.msra.mxu0 0.0
        %292 = vmatprep.subr.mxu0 0.0
        %293 = vmatpush2.msra.mxu0 0.0
        %294 = vmatprep.subr.mxu0 0.0
        %295 = vmatpush2.msra.mxu0 0.0
        %296 = vmatprep.subr.mxu0 0.0
        %297 = vmatpush2.msra.mxu0 0.0
        %298 = vmatprep.subr.mxu0 0.0
        %299 = vmatpush2.msra.mxu0 0.0
        %300 = vmatprep.subr.mxu0 0.0
        %301 = vmatpush2.msra.mxu0 0.0
        %302 = vmatprep.subr.mxu0 0.0
        %303 = vmatpush2.msra.mxu0 0.0
        %304 = vmatprep.subr.mxu0 0.0
        %305 = vmatpush2.msra.mxu0 0.0
        %306 = vmatprep.subr.mxu0 0.0
        %307 = vmatpush2.msra.mxu0 0.0
        %308 = vmatprep.subr.mxu0 0.0
        %309 = vmatpush2.msra.mxu0 0.0
        %310 = vmatprep.subr.mxu0 0.0
        %311 = vmatpush2.msra.mxu0 0.0
        %312 = vmatprep.subr.mxu0 0.0
        %313 = vmatpush2.msra.mxu0 0.0
        %314 = vmatprep.subr.mxu0 0.0
        %315 = vmatpush2.msra.mxu0 0.0
        %316 = vmatprep.mubr.f32.mxu0 0.0
        %v317 = vand.u32 %v216, 4294901760
        %v318 = vsub.f32 %v216, %v317
        %v319 = vand.u32 %v318, 4294901760
        %v320 = vsub.f32 %v318, %v319
        %v321 = vand.u32 %v320, 4294901760
        %322 = vmatmul.mubr.f32.gmra.mxu0 %v321
        %v323 = vpop.f32.mrf.mxu0
        %v324 = vadd.f32 0.0, %v323
        %v325 = vpop.f32.mrf.mxu0
        %326 = vmatprep.mubr.f32.mxu0 0.0
        %v327 = vand.u32 %v217, 4294901760
        %v328 = vsub.f32 %v217, %v327
        %v329 = vand.u32 %v328, 4294901760
        %v330 = vsub.f32 %v328, %v329
        %v331 = vand.u32 %v330, 4294901760
        %332 = vmatmul.mubr.f32.gmra.mxu0 %v331
        %v333 = vpop.f32.mrf.mxu0
        %v334 = vadd.f32 0.0, %v333
        %v335 = vpop.f32.mrf.mxu0
        %336 = vdwg.mxu0
        %337 = vmatprep.subr.mxu0 0.0
        %v338 = vand.u32 %v235, 4294901760
        %v339 = vsub.f32 %v235, %v338
        %v340 = vand.u32 %v339, 4294901760
        %v341 = vsub.f32 %v339, %v340
        %v342 = vand.u32 %v341, 4294901760
        %343 = vmatpush1.msra.mxu0 %v342
        %344 = vmatprep.subr.mxu0 0.0
        %v345 = vand.u32 %v234, 4294901760
        %v346 = vsub.f32 %v234, %v345
        %v347 = vand.u32 %v346, 4294901760
        %v348 = vsub.f32 %v346, %v347
        %v349 = vand.u32 %v348, 4294901760
        %350 = vmatpush1.msra.mxu0 %v349
        %351 = vmatprep.subr.mxu0 0.0
        %v352 = vand.u32 %v233, 4294901760
        %v353 = vsub.f32 %v233, %v352
        %v354 = vand.u32 %v353, 4294901760
        %v355 = vsub.f32 %v353, %v354
        %v356 = vand.u32 %v355, 4294901760
        %357 = vmatpush1.msra.mxu0 %v356
        %358 = vmatprep.subr.mxu0 0.0
        %v359 = vand.u32 %v232, 4294901760
        %v360 = vsub.f32 %v232, %v359
        %v361 = vand.u32 %v360, 4294901760
        %v362 = vsub.f32 %v360, %v361
        %v363 = vand.u32 %v362, 4294901760
        %364 = vmatpush1.msra.mxu0 %v363
        %365 = vmatprep.subr.mxu0 0.0
        %v366 = vand.u32 %v231, 4294901760
        %v367 = vsub.f32 %v231, %v366
        %v368 = vand.u32 %v367, 4294901760
        %v369 = vsub.f32 %v367, %v368
        %v370 = vand.u32 %v369, 4294901760
        %371 = vmatpush1.msra.mxu0 %v370
        %372 = vmatprep.subr.mxu0 0.0
        %v373 = vand.u32 %v230, 4294901760
        %v374 = vsub.f32 %v230, %v373
        %v375 = vand.u32 %v374, 4294901760
        %v376 = vsub.f32 %v374, %v375
        %v377 = vand.u32 %v376, 4294901760
        %378 = vmatpush1.msra.mxu0 %v377
        %379 = vmatprep.subr.mxu0 0.0
        %v380 = vand.u32 %v229, 4294901760
        %v381 = vsub.f32 %v229, %v380
        %v382 = vand.u32 %v381, 4294901760
        %v383 = vsub.f32 %v381, %v382
        %v384 = vand.u32 %v383, 4294901760
        %385 = vmatpush1.msra.mxu0 %v384
        %386 = vmatprep.subr.mxu0 0.0
        %v387 = vand.u32 %v228, 4294901760
        %v388 = vsub.f32 %v228, %v387
        %v389 = vand.u32 %v388, 4294901760
        %v390 = vsub.f32 %v388, %v389
        %v391 = vand.u32 %v390, 4294901760
        %392 = vmatpush1.msra.mxu0 %v391
        %393 = vmatprep.subr.mxu0 0.0
        %v394 = vand.u32 %v227, 4294901760
        %v395 = vsub.f32 %v227, %v394
        %v396 = vand.u32 %v395, 4294901760
        %v397 = vsub.f32 %v395, %v396
        %v398 = vand.u32 %v397, 4294901760
        %399 = vmatpush1.msra.mxu0 %v398
        %400 = vmatprep.subr.mxu0 0.0
        %v401 = vand.u32 %v226, 4294901760
        %v402 = vsub.f32 %v226, %v401
        %v403 = vand.u32 %v402, 4294901760
        %v404 = vsub.f32 %v402, %v403
        %v405 = vand.u32 %v404, 4294901760
        %406 = vmatpush1.msra.mxu0 %v405
        %407 = vmatprep.subr.mxu0 0.0
        %v408 = vand.u32 %v225, 4294901760
        %v409 = vsub.f32 %v225, %v408
        %v410 = vand.u32 %v409, 4294901760
        %v411 = vsub.f32 %v409, %v410
        %v412 = vand.u32 %v411, 4294901760
        %413 = vmatpush1.msra.mxu0 %v412
        %414 = vmatprep.subr.mxu0 0.0
        %v415 = vand.u32 %v224, 4294901760
        %v416 = vsub.f32 %v224, %v415
        %v417 = vand.u32 %v416, 4294901760
        %v418 = vsub.f32 %v416, %v417
        %v419 = vand.u32 %v418, 4294901760
        %420 = vmatpush1.msra.mxu0 %v419
        %421 = vmatprep.subr.mxu0 0.0
        %v422 = vand.u32 %v223, 4294901760
        %v423 = vsub.f32 %v223, %v422
        %v424 = vand.u32 %v423, 4294901760
        %v425 = vsub.f32 %v423, %v424
        %v426 = vand.u32 %v425, 4294901760
        %427 = vmatpush1.msra.mxu0 %v426
        %428 = vmatprep.subr.mxu0 0.0
        %v429 = vand.u32 %v222, 4294901760
        %v430 = vsub.f32 %v222, %v429
        %v431 = vand.u32 %v430, 4294901760
        %v432 = vsub.f32 %v430, %v431
        %v433 = vand.u32 %v432, 4294901760
        %434 = vmatpush1.msra.mxu0 %v433
        %435 = vmatprep.subr.mxu0 0.0
        %v436 = vand.u32 %v221, 4294901760
        %v437 = vsub.f32 %v221, %v436
        %v438 = vand.u32 %v437, 4294901760
        %v439 = vsub.f32 %v437, %v438
        %v440 = vand.u32 %v439, 4294901760
        %441 = vmatpush1.msra.mxu0 %v440
        %442 = vmatprep.subr.mxu0 0.0
        %v443 = vand.u32 %v220, 4294901760
        %v444 = vsub.f32 %v220, %v443
        %v445 = vand.u32 %v444, 4294901760
        %v446 = vsub.f32 %v444, %v445
        %v447 = vand.u32 %v446, 4294901760
        %448 = vmatpush1.msra.mxu0 %v447
        %449 = vmatprep.subr.mxu0 0.0
        %450 = vmatpush2.msra.mxu0 0.0
        %451 = vmatprep.subr.mxu0 0.0
        %452 = vmatpush2.msra.mxu0 0.0
        %453 = vmatprep.subr.mxu0 0.0
        %454 = vmatpush2.msra.mxu0 0.0
        %455 = vmatprep.subr.mxu0 0.0
        %456 = vmatpush2.msra.mxu0 0.0
        %457 = vmatprep.subr.mxu0 0.0
        %458 = vmatpush2.msra.mxu0 0.0
        %459 = vmatprep.subr.mxu0 0.0
        %460 = vmatpush2.msra.mxu0 0.0
        %461 = vmatprep.subr.mxu0 0.0
        %462 = vmatpush2.msra.mxu0 0.0
        %463 = vmatprep.subr.mxu0 0.0
        %464 = vmatpush2.msra.mxu0 0.0
        %465 = vmatprep.subr.mxu0 0.0
        %466 = vmatpush2.msra.mxu0 0.0
        %467 = vmatprep.subr.mxu0 0.0
        %468 = vmatpush2.msra.mxu0 0.0
        %469 = vmatprep.subr.mxu0 0.0
        %470 = vmatpush2.msra.mxu0 0.0
        %471 = vmatprep.subr.mxu0 0.0
        %472 = vmatpush2.msra.mxu0 0.0
        %473 = vmatprep.subr.mxu0 0.0
        %474 = vmatpush2.msra.mxu0 0.0
        %475 = vmatprep.subr.mxu0 0.0
        %476 = vmatpush2.msra.mxu0 0.0
        %477 = vmatprep.subr.mxu0 0.0
        %478 = vmatpush2.msra.mxu0 0.0
        %479 = vmatprep.subr.mxu0 0.0
        %480 = vmatpush2.msra.mxu0 0.0
        %481 = vmatprep.mubr.f32.mxu0 0.0
        %v482 = vand.u32 %v216, 4294901760
        %483 = vmatmul.mubr.f32.gmra.mxu0 %v482
        %v484 = vpop.f32.mrf.mxu0
        %v485 = vadd.f32 %v324, %v484
        %v486 = vpop.f32.mrf.mxu0
        %487 = vmatprep.mubr.f32.mxu0 0.0
        %v488 = vand.u32 %v217, 4294901760
        %489 = vmatmul.mubr.f32.gmra.mxu0 %v488
        %v490 = vpop.f32.mrf.mxu0
        %v491 = vadd.f32 %v334, %v490
        %v492 = vpop.f32.mrf.mxu0
        %493 = vdwg.mxu0
        %494 = vmatprep.subr.mxu0 0.0
        %v495 = vand.u32 %v235, 4294901760
        %v496 = vsub.f32 %v235, %v495
        %497 = vmatpush1.msra.mxu0 %v496
        %498 = vmatprep.subr.mxu0 0.0
        %v499 = vand.u32 %v234, 4294901760
        %v500 = vsub.f32 %v234, %v499
        %501 = vmatpush1.msra.mxu0 %v500
        %502 = vmatprep.subr.mxu0 0.0
        %v503 = vand.u32 %v233, 4294901760
        %v504 = vsub.f32 %v233, %v503
        %505 = vmatpush1.msra.mxu0 %v504
        %506 = vmatprep.subr.mxu0 0.0
        %v507 = vand.u32 %v232, 4294901760
        %v508 = vsub.f32 %v232, %v507
        %509 = vmatpush1.msra.mxu0 %v508
        %510 = vmatprep.subr.mxu0 0.0
        %v511 = vand.u32 %v231, 4294901760
        %v512 = vsub.f32 %v231, %v511
        %513 = vmatpush1.msra.mxu0 %v512
        %514 = vmatprep.subr.mxu0 0.0
        %v515 = vand.u32 %v230, 4294901760
        %v516 = vsub.f32 %v230, %v515
        %517 = vmatpush1.msra.mxu0 %v516
        %518 = vmatprep.subr.mxu0 0.0
        %v519 = vand.u32 %v229, 4294901760
        %v520 = vsub.f32 %v229, %v519
        %521 = vmatpush1.msra.mxu0 %v520
        %522 = vmatprep.subr.mxu0 0.0
        %v523 = vand.u32 %v228, 4294901760
        %v524 = vsub.f32 %v228, %v523
        %525 = vmatpush1.msra.mxu0 %v524
        %526 = vmatprep.subr.mxu0 0.0
        %v527 = vand.u32 %v227, 4294901760
        %v528 = vsub.f32 %v227, %v527
        %529 = vmatpush1.msra.mxu0 %v528
        %530 = vmatprep.subr.mxu0 0.0
        %v531 = vand.u32 %v226, 4294901760
        %v532 = vsub.f32 %v226, %v531
        %533 = vmatpush1.msra.mxu0 %v532
        %534 = vmatprep.subr.mxu0 0.0
        %v535 = vand.u32 %v225, 4294901760
        %v536 = vsub.f32 %v225, %v535
        %537 = vmatpush1.msra.mxu0 %v536
        %538 = vmatprep.subr.mxu0 0.0
        %v539 = vand.u32 %v224, 4294901760
        %v540 = vsub.f32 %v224, %v539
        %541 = vmatpush1.msra.mxu0 %v540
        %542 = vmatprep.subr.mxu0 0.0
        %v543 = vand.u32 %v223, 4294901760
        %v544 = vsub.f32 %v223, %v543
        %545 = vmatpush1.msra.mxu0 %v544
        %546 = vmatprep.subr.mxu0 0.0
        %v547 = vand.u32 %v222, 4294901760
        %v548 = vsub.f32 %v222, %v547
        %549 = vmatpush1.msra.mxu0 %v548
        %550 = vmatprep.subr.mxu0 0.0
        %v551 = vand.u32 %v221, 4294901760
        %v552 = vsub.f32 %v221, %v551
        %553 = vmatpush1.msra.mxu0 %v552
        %554 = vmatprep.subr.mxu0 0.0
        %v555 = vand.u32 %v220, 4294901760
        %v556 = vsub.f32 %v220, %v555
        %557 = vmatpush1.msra.mxu0 %v556
        %558 = vmatprep.subr.mxu0 0.0
        %559 = vmatpush2.msra.mxu0 0.0
        %560 = vmatprep.subr.mxu0 0.0
        %561 = vmatpush2.msra.mxu0 0.0
        %562 = vmatprep.subr.mxu0 0.0
        %563 = vmatpush2.msra.mxu0 0.0
        %564 = vmatprep.subr.mxu0 0.0
        %565 = vmatpush2.msra.mxu0 0.0
        %566 = vmatprep.subr.mxu0 0.0
        %567 = vmatpush2.msra.mxu0 0.0
        %568 = vmatprep.subr.mxu0 0.0
        %569 = vmatpush2.msra.mxu0 0.0
        %570 = vmatprep.subr.mxu0 0.0
        %571 = vmatpush2.msra.mxu0 0.0
        %572 = vmatprep.subr.mxu0 0.0
        %573 = vmatpush2.msra.mxu0 0.0
        %574 = vmatprep.subr.mxu0 0.0
        %575 = vmatpush2.msra.mxu0 0.0
        %576 = vmatprep.subr.mxu0 0.0
        %577 = vmatpush2.msra.mxu0 0.0
        %578 = vmatprep.subr.mxu0 0.0
        %579 = vmatpush2.msra.mxu0 0.0
        %580 = vmatprep.subr.mxu0 0.0
        %581 = vmatpush2.msra.mxu0 0.0
        %582 = vmatprep.subr.mxu0 0.0
        %583 = vmatpush2.msra.mxu0 0.0
        %584 = vmatprep.subr.mxu0 0.0
        %585 = vmatpush2.msra.mxu0 0.0
        %586 = vmatprep.subr.mxu0 0.0
        %587 = vmatpush2.msra.mxu0 0.0
        %588 = vmatprep.subr.mxu0 0.0
        %589 = vmatpush2.msra.mxu0 0.0
        %590 = vmatprep.mubr.f32.mxu0 0.0
        %v591 = vand.u32 %v216, 4294901760
        %v592 = vsub.f32 %v216, %v591
        %593 = vmatmul.mubr.f32.gmra.mxu0 %v592
        %v594 = vpop.f32.mrf.mxu0
        %v595 = vadd.f32 %v485, %v594
        %v596 = vpop.f32.mrf.mxu0
        %597 = vmatprep.mubr.f32.mxu0 0.0
        %v598 = vand.u32 %v217, 4294901760
        %v599 = vsub.f32 %v217, %v598
        %600 = vmatmul.mubr.f32.gmra.mxu0 %v599
        %v601 = vpop.f32.mrf.mxu0
        %v602 = vadd.f32 %v491, %v601
        %v603 = vpop.f32.mrf.mxu0
        %604 = vdwg.mxu0
        %605 = vmatprep.subr.mxu0 0.0
        %v606 = vand.u32 %v235, 4294901760
        %607 = vmatpush1.msra.mxu0 %v606
        %608 = vmatprep.subr.mxu0 0.0
        %v609 = vand.u32 %v234, 4294901760
        %610 = vmatpush1.msra.mxu0 %v609
        %611 = vmatprep.subr.mxu0 0.0
        %v612 = vand.u32 %v233, 4294901760
        %613 = vmatpush1.msra.mxu0 %v612
        %614 = vmatprep.subr.mxu0 0.0
        %v615 = vand.u32 %v232, 4294901760
        %616 = vmatpush1.msra.mxu0 %v615
        %617 = vmatprep.subr.mxu0 0.0
        %v618 = vand.u32 %v231, 4294901760
        %619 = vmatpush1.msra.mxu0 %v618
        %620 = vmatprep.subr.mxu0 0.0
        %v621 = vand.u32 %v230, 4294901760
        %622 = vmatpush1.msra.mxu0 %v621
        %623 = vmatprep.subr.mxu0 0.0
        %v624 = vand.u32 %v229, 4294901760
        %625 = vmatpush1.msra.mxu0 %v624
        %626 = vmatprep.subr.mxu0 0.0
        %v627 = vand.u32 %v228, 4294901760
        %628 = vmatpush1.msra.mxu0 %v627
        %629 = vmatprep.subr.mxu0 0.0
        %v630 = vand.u32 %v227, 4294901760
        %631 = vmatpush1.msra.mxu0 %v630
        %632 = vmatprep.subr.mxu0 0.0
        %v633 = vand.u32 %v226, 4294901760
        %634 = vmatpush1.msra.mxu0 %v633
        %635 = vmatprep.subr.mxu0 0.0
        %v636 = vand.u32 %v225, 4294901760
        %637 = vmatpush1.msra.mxu0 %v636
        %638 = vmatprep.subr.mxu0 0.0
        %v639 = vand.u32 %v224, 4294901760
        %640 = vmatpush1.msra.mxu0 %v639
        %641 = vmatprep.subr.mxu0 0.0
        %v642 = vand.u32 %v223, 4294901760
        %643 = vmatpush1.msra.mxu0 %v642
        %644 = vmatprep.subr.mxu0 0.0
        %v645 = vand.u32 %v222, 4294901760
        %646 = vmatpush1.msra.mxu0 %v645
        %647 = vmatprep.subr.mxu0 0.0
        %v648 = vand.u32 %v221, 4294901760
        %649 = vmatpush1.msra.mxu0 %v648
        %650 = vmatprep.subr.mxu0 0.0
        %v651 = vand.u32 %v220, 4294901760
        %652 = vmatpush1.msra.mxu0 %v651
        %653 = vmatprep.subr.mxu0 0.0
        %654 = vmatpush2.msra.mxu0 0.0
        %655 = vmatprep.subr.mxu0 0.0
        %656 = vmatpush2.msra.mxu0 0.0
        %657 = vmatprep.subr.mxu0 0.0
        %658 = vmatpush2.msra.mxu0 0.0
        %659 = vmatprep.subr.mxu0 0.0
        %660 = vmatpush2.msra.mxu0 0.0
        %661 = vmatprep.subr.mxu0 0.0
        %662 = vmatpush2.msra.mxu0 0.0
        %663 = vmatprep.subr.mxu0 0.0
        %664 = vmatpush2.msra.mxu0 0.0
        %665 = vmatprep.subr.mxu0 0.0
        %666 = vmatpush2.msra.mxu0 0.0
        %667 = vmatprep.subr.mxu0 0.0
        %668 = vmatpush2.msra.mxu0 0.0
        %669 = vmatprep.subr.mxu0 0.0
        %670 = vmatpush2.msra.mxu0 0.0
        %671 = vmatprep.subr.mxu0 0.0
        %672 = vmatpush2.msra.mxu0 0.0
        %673 = vmatprep.subr.mxu0 0.0
        %674 = vmatpush2.msra.mxu0 0.0
        %675 = vmatprep.subr.mxu0 0.0
        %676 = vmatpush2.msra.mxu0 0.0
        %677 = vmatprep.subr.mxu0 0.0
        %678 = vmatpush2.msra.mxu0 0.0
        %679 = vmatprep.subr.mxu0 0.0
        %680 = vmatpush2.msra.mxu0 0.0
        %681 = vmatprep.subr.mxu0 0.0
        %682 = vmatpush2.msra.mxu0 0.0
        %683 = vmatprep.subr.mxu0 0.0
        %684 = vmatpush2.msra.mxu0 0.0
        %685 = vmatprep.mubr.f32.mxu0 0.0
        %v686 = vand.u32 %v216, 4294901760
        %v687 = vsub.f32 %v216, %v686
        %v688 = vand.u32 %v687, 4294901760
        %689 = vmatmul.mubr.f32.gmra.mxu0 %v688
        %v690 = vpop.f32.mrf.mxu0
        %v691 = vadd.f32 %v595, %v690
        %v692 = vpop.f32.mrf.mxu0
        %693 = vmatprep.mubr.f32.mxu0 0.0
        %v694 = vand.u32 %v217, 4294901760
        %v695 = vsub.f32 %v217, %v694
        %v696 = vand.u32 %v695, 4294901760
        %697 = vmatmul.mubr.f32.gmra.mxu0 %v696
        %v698 = vpop.f32.mrf.mxu0
        %v699 = vadd.f32 %v602, %v698
        %v700 = vpop.f32.mrf.mxu0
        %701 = vdwg.mxu0
        %702 = vmatprep.subr.mxu0 0.0
        %v703 = vand.u32 %v235, 4294901760
        %v704 = vsub.f32 %v235, %v703
        %v705 = vand.u32 %v704, 4294901760
        %706 = vmatpush1.msra.mxu0 %v705
        %707 = vmatprep.subr.mxu0 0.0
        %v708 = vand.u32 %v234, 4294901760
        %v709 = vsub.f32 %v234, %v708
        %v710 = vand.u32 %v709, 4294901760
        %711 = vmatpush1.msra.mxu0 %v710
        %712 = vmatprep.subr.mxu0 0.0
        %v713 = vand.u32 %v233, 4294901760
        %v714 = vsub.f32 %v233, %v713
        %v715 = vand.u32 %v714, 4294901760
        %716 = vmatpush1.msra.mxu0 %v715
        %717 = vmatprep.subr.mxu0 0.0
        %v718 = vand.u32 %v232, 4294901760
        %v719 = vsub.f32 %v232, %v718
        %v720 = vand.u32 %v719, 4294901760
        %721 = vmatpush1.msra.mxu0 %v720
        %722 = vmatprep.subr.mxu0 0.0
        %v723 = vand.u32 %v231, 4294901760
        %v724 = vsub.f32 %v231, %v723
        %v725 = vand.u32 %v724, 4294901760
        %726 = vmatpush1.msra.mxu0 %v725
        %727 = vmatprep.subr.mxu0 0.0
        %v728 = vand.u32 %v230, 4294901760
        %v729 = vsub.f32 %v230, %v728
        %v730 = vand.u32 %v729, 4294901760
        %731 = vmatpush1.msra.mxu0 %v730
        %732 = vmatprep.subr.mxu0 0.0
        %v733 = vand.u32 %v229, 4294901760
        %v734 = vsub.f32 %v229, %v733
        %v735 = vand.u32 %v734, 4294901760
        %736 = vmatpush1.msra.mxu0 %v735
        %737 = vmatprep.subr.mxu0 0.0
        %v738 = vand.u32 %v228, 4294901760
        %v739 = vsub.f32 %v228, %v738
        %v740 = vand.u32 %v739, 4294901760
        %741 = vmatpush1.msra.mxu0 %v740
        %742 = vmatprep.subr.mxu0 0.0
        %v743 = vand.u32 %v227, 4294901760
        %v744 = vsub.f32 %v227, %v743
        %v745 = vand.u32 %v744, 4294901760
        %746 = vmatpush1.msra.mxu0 %v745
        %747 = vmatprep.subr.mxu0 0.0
        %v748 = vand.u32 %v226, 4294901760
        %v749 = vsub.f32 %v226, %v748
        %v750 = vand.u32 %v749, 4294901760
        %751 = vmatpush1.msra.mxu0 %v750
        %752 = vmatprep.subr.mxu0 0.0
        %v753 = vand.u32 %v225, 4294901760
        %v754 = vsub.f32 %v225, %v753
        %v755 = vand.u32 %v754, 4294901760
        %756 = vmatpush1.msra.mxu0 %v755
        %757 = vmatprep.subr.mxu0 0.0
        %v758 = vand.u32 %v224, 4294901760
        %v759 = vsub.f32 %v224, %v758
        %v760 = vand.u32 %v759, 4294901760
        %761 = vmatpush1.msra.mxu0 %v760
        %762 = vmatprep.subr.mxu0 0.0
        %v763 = vand.u32 %v223, 4294901760
        %v764 = vsub.f32 %v223, %v763
        %v765 = vand.u32 %v764, 4294901760
        %766 = vmatpush1.msra.mxu0 %v765
        %767 = vmatprep.subr.mxu0 0.0
        %v768 = vand.u32 %v222, 4294901760
        %v769 = vsub.f32 %v222, %v768
        %v770 = vand.u32 %v769, 4294901760
        %771 = vmatpush1.msra.mxu0 %v770
        %772 = vmatprep.subr.mxu0 0.0
        %v773 = vand.u32 %v221, 4294901760
        %v774 = vsub.f32 %v221, %v773
        %v775 = vand.u32 %v774, 4294901760
        %776 = vmatpush1.msra.mxu0 %v775
        %777 = vmatprep.subr.mxu0 0.0
        %v778 = vand.u32 %v220, 4294901760
        %v779 = vsub.f32 %v220, %v778
        %v780 = vand.u32 %v779, 4294901760
        %781 = vmatpush1.msra.mxu0 %v780
        %782 = vmatprep.subr.mxu0 0.0
        %783 = vmatpush2.msra.mxu0 0.0
        %784 = vmatprep.subr.mxu0 0.0
        %785 = vmatpush2.msra.mxu0 0.0
        %786 = vmatprep.subr.mxu0 0.0
        %787 = vmatpush2.msra.mxu0 0.0
        %788 = vmatprep.subr.mxu0 0.0
        %789 = vmatpush2.msra.mxu0 0.0
        %790 = vmatprep.subr.mxu0 0.0
        %791 = vmatpush2.msra.mxu0 0.0
        %792 = vmatprep.subr.mxu0 0.0
        %793 = vmatpush2.msra.mxu0 0.0
        %794 = vmatprep.subr.mxu0 0.0
        %795 = vmatpush2.msra.mxu0 0.0
        %796 = vmatprep.subr.mxu0 0.0
        %797 = vmatpush2.msra.mxu0 0.0
        %798 = vmatprep.subr.mxu0 0.0
        %799 = vmatpush2.msra.mxu0 0.0
        %800 = vmatprep.subr.mxu0 0.0
        %801 = vmatpush2.msra.mxu0 0.0
        %802 = vmatprep.subr.mxu0 0.0
        %803 = vmatpush2.msra.mxu0 0.0
        %804 = vmatprep.subr.mxu0 0.0
        %805 = vmatpush2.msra.mxu0 0.0
        %806 = vmatprep.subr.mxu0 0.0
        %807 = vmatpush2.msra.mxu0 0.0
        %808 = vmatprep.subr.mxu0 0.0
        %809 = vmatpush2.msra.mxu0 0.0
        %810 = vmatprep.subr.mxu0 0.0
        %811 = vmatpush2.msra.mxu0 0.0
        %812 = vmatprep.subr.mxu0 0.0
        %813 = vmatpush2.msra.mxu0 0.0
        %814 = vmatprep.mubr.f32.mxu0 0.0
        %v815 = vand.u32 %v216, 4294901760
        %816 = vmatmul.mubr.f32.gmra.mxu0 %v815
        %v817 = vpop.f32.mrf.mxu0
        %v818 = vadd.f32 %v691, %v817
        %v819 = vpop.f32.mrf.mxu0
        %820 = vmatprep.mubr.f32.mxu0 0.0
        %v821 = vand.u32 %v217, 4294901760
        %822 = vmatmul.mubr.f32.gmra.mxu0 %v821
        %v823 = vpop.f32.mrf.mxu0
        %v824 = vadd.f32 %v699, %v823
        %v825 = vpop.f32.mrf.mxu0
        %826 = vdwg.mxu0
        %827 = vmatprep.subr.mxu0 0.0
        %v828 = vand.u32 %v235, 4294901760
        %829 = vmatpush1.msra.mxu0 %v828
        %830 = vmatprep.subr.mxu0 0.0
        %v831 = vand.u32 %v234, 4294901760
        %832 = vmatpush1.msra.mxu0 %v831
        %833 = vmatprep.subr.mxu0 0.0
        %v834 = vand.u32 %v233, 4294901760
        %835 = vmatpush1.msra.mxu0 %v834
        %836 = vmatprep.subr.mxu0 0.0
        %v837 = vand.u32 %v232, 4294901760
        %838 = vmatpush1.msra.mxu0 %v837
        %839 = vmatprep.subr.mxu0 0.0
        %v840 = vand.u32 %v231, 4294901760
        %841 = vmatpush1.msra.mxu0 %v840
        %842 = vmatprep.subr.mxu0 0.0
        %v843 = vand.u32 %v230, 4294901760
        %844 = vmatpush1.msra.mxu0 %v843
        %845 = vmatprep.subr.mxu0 0.0
        %v846 = vand.u32 %v229, 4294901760
        %847 = vmatpush1.msra.mxu0 %v846
        %848 = vmatprep.subr.mxu0 0.0
        %v849 = vand.u32 %v228, 4294901760
        %850 = vmatpush1.msra.mxu0 %v849
        %851 = vmatprep.subr.mxu0 0.0
        %v852 = vand.u32 %v227, 4294901760
        %853 = vmatpush1.msra.mxu0 %v852
        %854 = vmatprep.subr.mxu0 0.0
        %v855 = vand.u32 %v226, 4294901760
        %856 = vmatpush1.msra.mxu0 %v855
        %857 = vmatprep.subr.mxu0 0.0
        %v858 = vand.u32 %v225, 4294901760
        %859 = vmatpush1.msra.mxu0 %v858
        %860 = vmatprep.subr.mxu0 0.0
        %v861 = vand.u32 %v224, 4294901760
        %862 = vmatpush1.msra.mxu0 %v861
        %863 = vmatprep.subr.mxu0 0.0
        %v864 = vand.u32 %v223, 4294901760
        %865 = vmatpush1.msra.mxu0 %v864
        %866 = vmatprep.subr.mxu0 0.0
        %v867 = vand.u32 %v222, 4294901760
        %868 = vmatpush1.msra.mxu0 %v867
        %869 = vmatprep.subr.mxu0 0.0
        %v870 = vand.u32 %v221, 4294901760
        %871 = vmatpush1.msra.mxu0 %v870
        %872 = vmatprep.subr.mxu0 0.0
        %v873 = vand.u32 %v220, 4294901760
        %874 = vmatpush1.msra.mxu0 %v873
        %875 = vmatprep.subr.mxu0 0.0
        %876 = vmatpush2.msra.mxu0 0.0
        %877 = vmatprep.subr.mxu0 0.0
        %878 = vmatpush2.msra.mxu0 0.0
        %879 = vmatprep.subr.mxu0 0.0
        %880 = vmatpush2.msra.mxu0 0.0
        %881 = vmatprep.subr.mxu0 0.0
        %882 = vmatpush2.msra.mxu0 0.0
        %883 = vmatprep.subr.mxu0 0.0
        %884 = vmatpush2.msra.mxu0 0.0
        %885 = vmatprep.subr.mxu0 0.0
        %886 = vmatpush2.msra.mxu0 0.0
        %887 = vmatprep.subr.mxu0 0.0
        %888 = vmatpush2.msra.mxu0 0.0
        %889 = vmatprep.subr.mxu0 0.0
        %890 = vmatpush2.msra.mxu0 0.0
        %891 = vmatprep.subr.mxu0 0.0
        %892 = vmatpush2.msra.mxu0 0.0
        %893 = vmatprep.subr.mxu0 0.0
        %894 = vmatpush2.msra.mxu0 0.0
        %895 = vmatprep.subr.mxu0 0.0
        %896 = vmatpush2.msra.mxu0 0.0
        %897 = vmatprep.subr.mxu0 0.0
        %898 = vmatpush2.msra.mxu0 0.0
        %899 = vmatprep.subr.mxu0 0.0
        %900 = vmatpush2.msra.mxu0 0.0
        %901 = vmatprep.subr.mxu0 0.0
        %902 = vmatpush2.msra.mxu0 0.0
        %903 = vmatprep.subr.mxu0 0.0
        %904 = vmatpush2.msra.mxu0 0.0
        %905 = vmatprep.subr.mxu0 0.0
        %906 = vmatpush2.msra.mxu0 0.0
        %907 = vmatprep.mubr.f32.mxu0 0.0
        %v908 = vand.u32 %v216, 4294901760
        %909 = vmatmul.mubr.f32.gmra.mxu0 %v908
        %v910 = vpop.f32.mrf.mxu0
        %v911 = vadd.f32 %v818, %v910
        %v912 = vpop.f32.mrf.mxu0
        %913 = vmatprep.mubr.f32.mxu0 0.0
        %v914 = vand.u32 %v217, 4294901760
        %915 = vmatmul.mubr.f32.gmra.mxu0 %v914
        %v916 = vpop.f32.mrf.mxu0
        %v917 = vadd.f32 %v824, %v916
        %v918 = vpop.f32.mrf.mxu0
        %919 = vdwg.mxu0
        %vm920 = vcmask 130048
        %v922 = vsel %vm920, %v218, 0
        %v925 = vsel %vm920, %v219, 0
        %927 = vmatprep.subr.mxu0 0.0
        %928 = vmatpush1.msra.mxu0 0.0
        %929 = vmatprep.subr.mxu0 0.0
        %930 = vmatpush1.msra.mxu0 0.0
        %931 = vmatprep.subr.mxu0 0.0
        %932 = vmatpush1.msra.mxu0 0.0
        %933 = vmatprep.subr.mxu0 0.0
        %934 = vmatpush1.msra.mxu0 0.0
        %935 = vmatprep.subr.mxu0 0.0
        %936 = vmatpush1.msra.mxu0 0.0
        %937 = vmatprep.subr.mxu0 0.0
        %938 = vmatpush1.msra.mxu0 0.0
        %939 = vmatprep.subr.mxu0 0.0
        %940 = vmatpush1.msra.mxu0 0.0
        %941 = vmatprep.subr.mxu0 0.0
        %942 = vmatpush1.msra.mxu0 0.0
        %943 = vmatprep.subr.mxu0 0.0
        %944 = vmatpush1.msra.mxu0 0.0
        %945 = vmatprep.subr.mxu0 0.0
        %946 = vmatpush1.msra.mxu0 0.0
        %947 = vmatprep.subr.mxu0 0.0
        %948 = vmatpush1.msra.mxu0 0.0
        %949 = vmatprep.subr.mxu0 0.0
        %950 = vmatpush1.msra.mxu0 0.0
        %951 = vmatprep.subr.mxu0 0.0
        %952 = vmatpush1.msra.mxu0 0.0
        %953 = vmatprep.subr.mxu0 0.0
        %954 = vmatpush1.msra.mxu0 0.0
        %955 = vmatprep.subr.mxu0 0.0
        %v956 = vand.u32 %v917, 4294901760
        %957 = vmatpush1.msra.mxu0 %v956
        %958 = vmatprep.subr.mxu0 0.0
        %v959 = vand.u32 %v911, 4294901760
        %960 = vmatpush1.msra.mxu0 %v959
        %961 = vmatprep.subr.mxu0 0.0
        %962 = vmatpush2.msra.mxu0 0.0
        %963 = vmatprep.subr.mxu0 0.0
        %964 = vmatpush2.msra.mxu0 0.0
        %965 = vmatprep.subr.mxu0 0.0
        %966 = vmatpush2.msra.mxu0 0.0
        %967 = vmatprep.subr.mxu0 0.0
        %968 = vmatpush2.msra.mxu0 0.0
        %969 = vmatprep.subr.mxu0 0.0
        %970 = vmatpush2.msra.mxu0 0.0
        %971 = vmatprep.subr.mxu0 0.0
        %972 = vmatpush2.msra.mxu0 0.0
        %973 = vmatprep.subr.mxu0 0.0
        %974 = vmatpush2.msra.mxu0 0.0
        %975 = vmatprep.subr.mxu0 0.0
        %976 = vmatpush2.msra.mxu0 0.0
        %977 = vmatprep.subr.mxu0 0.0
        %978 = vmatpush2.msra.mxu0 0.0
        %979 = vmatprep.subr.mxu0 0.0
        %980 = vmatpush2.msra.mxu0 0.0
        %981 = vmatprep.subr.mxu0 0.0
        %982 = vmatpush2.msra.mxu0 0.0
        %983 = vmatprep.subr.mxu0 0.0
        %984 = vmatpush2.msra.mxu0 0.0
        %985 = vmatprep.subr.mxu0 0.0
        %986 = vmatpush2.msra.mxu0 0.0
        %987 = vmatprep.subr.mxu0 0.0
        %988 = vmatpush2.msra.mxu0 0.0
        %989 = vmatprep.subr.mxu0 0.0
        %990 = vmatpush2.msra.mxu0 0.0
        %991 = vmatprep.subr.mxu0 0.0
        %992 = vmatpush2.msra.mxu0 0.0
        %993 = vmatprep.mubr.f32.mxu0 0.0
        %v994 = vand.u32 %v922, 4294901760
        %v995 = vsub.f32 %v922, %v994
        %v996 = vand.u32 %v995, 4294901760
        %v997 = vsub.f32 %v995, %v996
        %v998 = vand.u32 %v997, 4294901760
        %999 = vmatmul.mubr.f32.gmra.mxu0 %v998
        %v1000 = vpop.f32.mrf.mxu0
        %v1001 = vadd.f32 0.0, %v1000
        %v1002 = vpop.f32.mrf.mxu0
        %1003 = vmatprep.mubr.f32.mxu0 0.0
        %v1004 = vand.u32 %v925, 4294901760
        %v1005 = vsub.f32 %v925, %v1004
        %v1006 = vand.u32 %v1005, 4294901760
        %v1007 = vsub.f32 %v1005, %v1006
        %v1008 = vand.u32 %v1007, 4294901760
        %1009 = vmatmul.mubr.f32.gmra.mxu0 %v1008
        %v1010 = vpop.f32.mrf.mxu0
        %v1011 = vadd.f32 0.0, %v1010
        %v1012 = vpop.f32.mrf.mxu0
        %1013 = vdwg.mxu0
        %1014 = vmatprep.subr.mxu0 0.0
        %1015 = vmatpush1.msra.mxu0 0.0
        %1016 = vmatprep.subr.mxu0 0.0
        %1017 = vmatpush1.msra.mxu0 0.0
        %1018 = vmatprep.subr.mxu0 0.0
        %1019 = vmatpush1.msra.mxu0 0.0
        %1020 = vmatprep.subr.mxu0 0.0
        %1021 = vmatpush1.msra.mxu0 0.0
        %1022 = vmatprep.subr.mxu0 0.0
        %1023 = vmatpush1.msra.mxu0 0.0
        %1024 = vmatprep.subr.mxu0 0.0
        %1025 = vmatpush1.msra.mxu0 0.0
        %1026 = vmatprep.subr.mxu0 0.0
        %1027 = vmatpush1.msra.mxu0 0.0
        %1028 = vmatprep.subr.mxu0 0.0
        %1029 = vmatpush1.msra.mxu0 0.0
        %1030 = vmatprep.subr.mxu0 0.0
        %1031 = vmatpush1.msra.mxu0 0.0
        %1032 = vmatprep.subr.mxu0 0.0
        %1033 = vmatpush1.msra.mxu0 0.0
        %1034 = vmatprep.subr.mxu0 0.0
        %1035 = vmatpush1.msra.mxu0 0.0
        %1036 = vmatprep.subr.mxu0 0.0
        %1037 = vmatpush1.msra.mxu0 0.0
        %1038 = vmatprep.subr.mxu0 0.0
        %1039 = vmatpush1.msra.mxu0 0.0
        %1040 = vmatprep.subr.mxu0 0.0
        %1041 = vmatpush1.msra.mxu0 0.0
        %1042 = vmatprep.subr.mxu0 0.0
        %v1043 = vand.u32 %v917, 4294901760
        %v1044 = vsub.f32 %v917, %v1043
        %v1045 = vand.u32 %v1044, 4294901760
        %v1046 = vsub.f32 %v1044, %v1045
        %v1047 = vand.u32 %v1046, 4294901760
        %1048 = vmatpush1.msra.mxu0 %v1047
        %1049 = vmatprep.subr.mxu0 0.0
        %v1050 = vand.u32 %v911, 4294901760
        %v1051 = vsub.f32 %v911, %v1050
        %v1052 = vand.u32 %v1051, 4294901760
        %v1053 = vsub.f32 %v1051, %v1052
        %v1054 = vand.u32 %v1053, 4294901760
        %1055 = vmatpush1.msra.mxu0 %v1054
        %1056 = vmatprep.subr.mxu0 0.0
        %1057 = vmatpush2.msra.mxu0 0.0
        %1058 = vmatprep.subr.mxu0 0.0
        %1059 = vmatpush2.msra.mxu0 0.0
        %1060 = vmatprep.subr.mxu0 0.0
        %1061 = vmatpush2.msra.mxu0 0.0
        %1062 = vmatprep.subr.mxu0 0.0
        %1063 = vmatpush2.msra.mxu0 0.0
        %1064 = vmatprep.subr.mxu0 0.0
        %1065 = vmatpush2.msra.mxu0 0.0
        %1066 = vmatprep.subr.mxu0 0.0
        %1067 = vmatpush2.msra.mxu0 0.0
        %1068 = vmatprep.subr.mxu0 0.0
        %1069 = vmatpush2.msra.mxu0 0.0
        %1070 = vmatprep.subr.mxu0 0.0
        %1071 = vmatpush2.msra.mxu0 0.0
        %1072 = vmatprep.subr.mxu0 0.0
        %1073 = vmatpush2.msra.mxu0 0.0
        %1074 = vmatprep.subr.mxu0 0.0
        %1075 = vmatpush2.msra.mxu0 0.0
        %1076 = vmatprep.subr.mxu0 0.0
        %1077 = vmatpush2.msra.mxu0 0.0
        %1078 = vmatprep.subr.mxu0 0.0
        %1079 = vmatpush2.msra.mxu0 0.0
        %1080 = vmatprep.subr.mxu0 0.0
        %1081 = vmatpush2.msra.mxu0 0.0
        %1082 = vmatprep.subr.mxu0 0.0
        %1083 = vmatpush2.msra.mxu0 0.0
        %1084 = vmatprep.subr.mxu0 0.0
        %1085 = vmatpush2.msra.mxu0 0.0
        %1086 = vmatprep.subr.mxu0 0.0
        %1087 = vmatpush2.msra.mxu0 0.0
        %1088 = vmatprep.mubr.f32.mxu0 0.0
        %v1089 = vand.u32 %v922, 4294901760
        %1090 = vmatmul.mubr.f32.gmra.mxu0 %v1089
        %v1091 = vpop.f32.mrf.mxu0
        %v1092 = vadd.f32 %v1001, %v1091
        %v1093 = vpop.f32.mrf.mxu0
        %1094 = vmatprep.mubr.f32.mxu0 0.0
        %v1095 = vand.u32 %v925, 4294901760
        %1096 = vmatmul.mubr.f32.gmra.mxu0 %v1095
        %v1097 = vpop.f32.mrf.mxu0
        %v1098 = vadd.f32 %v1011, %v1097
        %v1099 = vpop.f32.mrf.mxu0
        %1100 = vdwg.mxu0
        %1101 = vmatprep.subr.mxu0 0.0
        %1102 = vmatpush1.msra.mxu0 0.0
        %1103 = vmatprep.subr.mxu0 0.0
        %1104 = vmatpush1.msra.mxu0 0.0
        %1105 = vmatprep.subr.mxu0 0.0
        %1106 = vmatpush1.msra.mxu0 0.0
        %1107 = vmatprep.subr.mxu0 0.0
        %1108 = vmatpush1.msra.mxu0 0.0
        %1109 = vmatprep.subr.mxu0 0.0
        %1110 = vmatpush1.msra.mxu0 0.0
        %1111 = vmatprep.subr.mxu0 0.0
        %1112 = vmatpush1.msra.mxu0 0.0
        %1113 = vmatprep.subr.mxu0 0.0
        %1114 = vmatpush1.msra.mxu0 0.0
        %1115 = vmatprep.subr.mxu0 0.0
        %1116 = vmatpush1.msra.mxu0 0.0
        %1117 = vmatprep.subr.mxu0 0.0
        %1118 = vmatpush1.msra.mxu0 0.0
        %1119 = vmatprep.subr.mxu0 0.0
        %1120 = vmatpush1.msra.mxu0 0.0
        %1121 = vmatprep.subr.mxu0 0.0
        %1122 = vmatpush1.msra.mxu0 0.0
        %1123 = vmatprep.subr.mxu0 0.0
        %1124 = vmatpush1.msra.mxu0 0.0
        %1125 = vmatprep.subr.mxu0 0.0
        %1126 = vmatpush1.msra.mxu0 0.0
        %1127 = vmatprep.subr.mxu0 0.0
        %1128 = vmatpush1.msra.mxu0 0.0
        %1129 = vmatprep.subr.mxu0 0.0
        %v1130 = vand.u32 %v917, 4294901760
        %v1131 = vsub.f32 %v917, %v1130
        %1132 = vmatpush1.msra.mxu0 %v1131
        %1133 = vmatprep.subr.mxu0 0.0
        %v1134 = vand.u32 %v911, 4294901760
        %v1135 = vsub.f32 %v911, %v1134
        %1136 = vmatpush1.msra.mxu0 %v1135
        %1137 = vmatprep.subr.mxu0 0.0
        %1138 = vmatpush2.msra.mxu0 0.0
        %1139 = vmatprep.subr.mxu0 0.0
        %1140 = vmatpush2.msra.mxu0 0.0
        %1141 = vmatprep.subr.mxu0 0.0
        %1142 = vmatpush2.msra.mxu0 0.0
        %1143 = vmatprep.subr.mxu0 0.0
        %1144 = vmatpush2.msra.mxu0 0.0
        %1145 = vmatprep.subr.mxu0 0.0
        %1146 = vmatpush2.msra.mxu0 0.0
        %1147 = vmatprep.subr.mxu0 0.0
        %1148 = vmatpush2.msra.mxu0 0.0
        %1149 = vmatprep.subr.mxu0 0.0
        %1150 = vmatpush2.msra.mxu0 0.0
        %1151 = vmatprep.subr.mxu0 0.0
        %1152 = vmatpush2.msra.mxu0 0.0
        %1153 = vmatprep.subr.mxu0 0.0
        %1154 = vmatpush2.msra.mxu0 0.0
        %1155 = vmatprep.subr.mxu0 0.0
        %1156 = vmatpush2.msra.mxu0 0.0
        %1157 = vmatprep.subr.mxu0 0.0
        %1158 = vmatpush2.msra.mxu0 0.0
        %1159 = vmatprep.subr.mxu0 0.0
        %1160 = vmatpush2.msra.mxu0 0.0
        %1161 = vmatprep.subr.mxu0 0.0
        %1162 = vmatpush2.msra.mxu0 0.0
        %1163 = vmatprep.subr.mxu0 0.0
        %1164 = vmatpush2.msra.mxu0 0.0
        %1165 = vmatprep.subr.mxu0 0.0
        %1166 = vmatpush2.msra.mxu0 0.0
        %1167 = vmatprep.subr.mxu0 0.0
        %1168 = vmatpush2.msra.mxu0 0.0
        %1169 = vmatprep.mubr.f32.mxu0 0.0
        %v1170 = vand.u32 %v922, 4294901760
        %v1171 = vsub.f32 %v922, %v1170
        %1172 = vmatmul.mubr.f32.gmra.mxu0 %v1171
        %v1173 = vpop.f32.mrf.mxu0
        %v1174 = vadd.f32 %v1092, %v1173
        %v1175 = vpop.f32.mrf.mxu0
        %1176 = vmatprep.mubr.f32.mxu0 0.0
        %v1177 = vand.u32 %v925, 4294901760
        %v1178 = vsub.f32 %v925, %v1177
        %1179 = vmatmul.mubr.f32.gmra.mxu0 %v1178
        %v1180 = vpop.f32.mrf.mxu0
        %v1181 = vadd.f32 %v1098, %v1180
        %v1182 = vpop.f32.mrf.mxu0
        %1183 = vdwg.mxu0
        %1184 = vmatprep.subr.mxu0 0.0
        %1185 = vmatpush1.msra.mxu0 0.0
        %1186 = vmatprep.subr.mxu0 0.0
        %1187 = vmatpush1.msra.mxu0 0.0
        %1188 = vmatprep.subr.mxu0 0.0
        %1189 = vmatpush1.msra.mxu0 0.0
        %1190 = vmatprep.subr.mxu0 0.0
        %1191 = vmatpush1.msra.mxu0 0.0
        %1192 = vmatprep.subr.mxu0 0.0
        %1193 = vmatpush1.msra.mxu0 0.0
        %1194 = vmatprep.subr.mxu0 0.0
        %1195 = vmatpush1.msra.mxu0 0.0
        %1196 = vmatprep.subr.mxu0 0.0
        %1197 = vmatpush1.msra.mxu0 0.0
        %1198 = vmatprep.subr.mxu0 0.0
        %1199 = vmatpush1.msra.mxu0 0.0
        %1200 = vmatprep.subr.mxu0 0.0
        %1201 = vmatpush1.msra.mxu0 0.0
        %1202 = vmatprep.subr.mxu0 0.0
        %1203 = vmatpush1.msra.mxu0 0.0
        %1204 = vmatprep.subr.mxu0 0.0
        %1205 = vmatpush1.msra.mxu0 0.0
        %1206 = vmatprep.subr.mxu0 0.0
        %1207 = vmatpush1.msra.mxu0 0.0
        %1208 = vmatprep.subr.mxu0 0.0
        %1209 = vmatpush1.msra.mxu0 0.0
        %1210 = vmatprep.subr.mxu0 0.0
        %1211 = vmatpush1.msra.mxu0 0.0
        %1212 = vmatprep.subr.mxu0 0.0
        %v1213 = vand.u32 %v917, 4294901760
        %1214 = vmatpush1.msra.mxu0 %v1213
        %1215 = vmatprep.subr.mxu0 0.0
        %v1216 = vand.u32 %v911, 4294901760
        %1217 = vmatpush1.msra.mxu0 %v1216
        %1218 = vmatprep.subr.mxu0 0.0
        %1219 = vmatpush2.msra.mxu0 0.0
        %1220 = vmatprep.subr.mxu0 0.0
        %1221 = vmatpush2.msra.mxu0 0.0
        %1222 = vmatprep.subr.mxu0 0.0
        %1223 = vmatpush2.msra.mxu0 0.0
        %1224 = vmatprep.subr.mxu0 0.0
        %1225 = vmatpush2.msra.mxu0 0.0
        %1226 = vmatprep.subr.mxu0 0.0
        %1227 = vmatpush2.msra.mxu0 0.0
        %1228 = vmatprep.subr.mxu0 0.0
        %1229 = vmatpush2.msra.mxu0 0.0
        %1230 = vmatprep.subr.mxu0 0.0
        %1231 = vmatpush2.msra.mxu0 0.0
        %1232 = vmatprep.subr.mxu0 0.0
        %1233 = vmatpush2.msra.mxu0 0.0
        %1234 = vmatprep.subr.mxu0 0.0
        %1235 = vmatpush2.msra.mxu0 0.0
        %1236 = vmatprep.subr.mxu0 0.0
        %1237 = vmatpush2.msra.mxu0 0.0
        %1238 = vmatprep.subr.mxu0 0.0
        %1239 = vmatpush2.msra.mxu0 0.0
        %1240 = vmatprep.subr.mxu0 0.0
        %1241 = vmatpush2.msra.mxu0 0.0
        %1242 = vmatprep.subr.mxu0 0.0
        %1243 = vmatpush2.msra.mxu0 0.0
        %1244 = vmatprep.subr.mxu0 0.0
        %1245 = vmatpush2.msra.mxu0 0.0
        %1246 = vmatprep.subr.mxu0 0.0
        %1247 = vmatpush2.msra.mxu0 0.0
        %1248 = vmatprep.subr.mxu0 0.0
        %1249 = vmatpush2.msra.mxu0 0.0
        %1250 = vmatprep.mubr.f32.mxu0 0.0
        %v1251 = vand.u32 %v922, 4294901760
        %v1252 = vsub.f32 %v922, %v1251
        %v1253 = vand.u32 %v1252, 4294901760
        %1254 = vmatmul.mubr.f32.gmra.mxu0 %v1253
        %v1255 = vpop.f32.mrf.mxu0
        %v1256 = vadd.f32 %v1174, %v1255
        %v1257 = vpop.f32.mrf.mxu0
        %1258 = vmatprep.mubr.f32.mxu0 0.0
        %v1259 = vand.u32 %v925, 4294901760
        %v1260 = vsub.f32 %v925, %v1259
        %v1261 = vand.u32 %v1260, 4294901760
        %1262 = vmatmul.mubr.f32.gmra.mxu0 %v1261
        %v1263 = vpop.f32.mrf.mxu0
        %v1264 = vadd.f32 %v1181, %v1263
        %v1265 = vpop.f32.mrf.mxu0
        %1266 = vdwg.mxu0
        %1267 = vmatprep.subr.mxu0 0.0
        %1268 = vmatpush1.msra.mxu0 0.0
        %1269 = vmatprep.subr.mxu0 0.0
        %1270 = vmatpush1.msra.mxu0 0.0
        %1271 = vmatprep.subr.mxu0 0.0
        %1272 = vmatpush1.msra.mxu0 0.0
        %1273 = vmatprep.subr.mxu0 0.0
        %1274 = vmatpush1.msra.mxu0 0.0
        %1275 = vmatprep.subr.mxu0 0.0
        %1276 = vmatpush1.msra.mxu0 0.0
        %1277 = vmatprep.subr.mxu0 0.0
        %1278 = vmatpush1.msra.mxu0 0.0
        %1279 = vmatprep.subr.mxu0 0.0
        %1280 = vmatpush1.msra.mxu0 0.0
        %1281 = vmatprep.subr.mxu0 0.0
        %1282 = vmatpush1.msra.mxu0 0.0
        %1283 = vmatprep.subr.mxu0 0.0
        %1284 = vmatpush1.msra.mxu0 0.0
        %1285 = vmatprep.subr.mxu0 0.0
        %1286 = vmatpush1.msra.mxu0 0.0
        %1287 = vmatprep.subr.mxu0 0.0
        %1288 = vmatpush1.msra.mxu0 0.0
        %1289 = vmatprep.subr.mxu0 0.0
        %1290 = vmatpush1.msra.mxu0 0.0
        %1291 = vmatprep.subr.mxu0 0.0
        %1292 = vmatpush1.msra.mxu0 0.0
        %1293 = vmatprep.subr.mxu0 0.0
        %1294 = vmatpush1.msra.mxu0 0.0
        %1295 = vmatprep.subr.mxu0 0.0
        %v1296 = vand.u32 %v917, 4294901760
        %v1297 = vsub.f32 %v917, %v1296
        %v1298 = vand.u32 %v1297, 4294901760
        %1299 = vmatpush1.msra.mxu0 %v1298
        %1300 = vmatprep.subr.mxu0 0.0
        %v1301 = vand.u32 %v911, 4294901760
        %v1302 = vsub.f32 %v911, %v1301
        %v1303 = vand.u32 %v1302, 4294901760
        %1304 = vmatpush1.msra.mxu0 %v1303
        %1305 = vmatprep.subr.mxu0 0.0
        %1306 = vmatpush2.msra.mxu0 0.0
        %1307 = vmatprep.subr.mxu0 0.0
        %1308 = vmatpush2.msra.mxu0 0.0
        %1309 = vmatprep.subr.mxu0 0.0
        %1310 = vmatpush2.msra.mxu0 0.0
        %1311 = vmatprep.subr.mxu0 0.0
        %1312 = vmatpush2.msra.mxu0 0.0
        %1313 = vmatprep.subr.mxu0 0.0
        %1314 = vmatpush2.msra.mxu0 0.0
        %1315 = vmatprep.subr.mxu0 0.0
        %1316 = vmatpush2.msra.mxu0 0.0
        %1317 = vmatprep.subr.mxu0 0.0
        %1318 = vmatpush2.msra.mxu0 0.0
        %1319 = vmatprep.subr.mxu0 0.0
        %1320 = vmatpush2.msra.mxu0 0.0
        %1321 = vmatprep.subr.mxu0 0.0
        %1322 = vmatpush2.msra.mxu0 0.0
        %1323 = vmatprep.subr.mxu0 0.0
        %1324 = vmatpush2.msra.mxu0 0.0
        %1325 = vmatprep.subr.mxu0 0.0
        %1326 = vmatpush2.msra.mxu0 0.0
        %1327 = vmatprep.subr.mxu0 0.0
        %1328 = vmatpush2.msra.mxu0 0.0
        %1329 = vmatprep.subr.mxu0 0.0
        %1330 = vmatpush2.msra.mxu0 0.0
        %1331 = vmatprep.subr.mxu0 0.0
        %1332 = vmatpush2.msra.mxu0 0.0
        %1333 = vmatprep.subr.mxu0 0.0
        %1334 = vmatpush2.msra.mxu0 0.0
        %1335 = vmatprep.subr.mxu0 0.0
        %1336 = vmatpush2.msra.mxu0 0.0
        %1337 = vmatprep.mubr.f32.mxu0 0.0
        %v1338 = vand.u32 %v922, 4294901760
        %1339 = vmatmul.mubr.f32.gmra.mxu0 %v1338
        %v1340 = vpop.f32.mrf.mxu0
        %v1341 = vadd.f32 %v1256, %v1340
        %v1342 = vpop.f32.mrf.mxu0
        %1343 = vmatprep.mubr.f32.mxu0 0.0
        %v1344 = vand.u32 %v925, 4294901760
        %1345 = vmatmul.mubr.f32.gmra.mxu0 %v1344
        %v1346 = vpop.f32.mrf.mxu0
        %v1347 = vadd.f32 %v1264, %v1346
        %v1348 = vpop.f32.mrf.mxu0
        %1349 = vdwg.mxu0
        %1350 = vmatprep.subr.mxu0 0.0
        %1351 = vmatpush1.msra.mxu0 0.0
        %1352 = vmatprep.subr.mxu0 0.0
        %1353 = vmatpush1.msra.mxu0 0.0
        %1354 = vmatprep.subr.mxu0 0.0
        %1355 = vmatpush1.msra.mxu0 0.0
        %1356 = vmatprep.subr.mxu0 0.0
        %1357 = vmatpush1.msra.mxu0 0.0
        %1358 = vmatprep.subr.mxu0 0.0
        %1359 = vmatpush1.msra.mxu0 0.0
        %1360 = vmatprep.subr.mxu0 0.0
        %1361 = vmatpush1.msra.mxu0 0.0
        %1362 = vmatprep.subr.mxu0 0.0
        %1363 = vmatpush1.msra.mxu0 0.0
        %1364 = vmatprep.subr.mxu0 0.0
        %1365 = vmatpush1.msra.mxu0 0.0
        %1366 = vmatprep.subr.mxu0 0.0
        %1367 = vmatpush1.msra.mxu0 0.0
        %1368 = vmatprep.subr.mxu0 0.0
        %1369 = vmatpush1.msra.mxu0 0.0
        %1370 = vmatprep.subr.mxu0 0.0
        %1371 = vmatpush1.msra.mxu0 0.0
        %1372 = vmatprep.subr.mxu0 0.0
        %1373 = vmatpush1.msra.mxu0 0.0
        %1374 = vmatprep.subr.mxu0 0.0
        %1375 = vmatpush1.msra.mxu0 0.0
        %1376 = vmatprep.subr.mxu0 0.0
        %1377 = vmatpush1.msra.mxu0 0.0
        %1378 = vmatprep.subr.mxu0 0.0
        %v1379 = vand.u32 %v917, 4294901760
        %1380 = vmatpush1.msra.mxu0 %v1379
        %1381 = vmatprep.subr.mxu0 0.0
        %v1382 = vand.u32 %v911, 4294901760
        %1383 = vmatpush1.msra.mxu0 %v1382
        %1384 = vmatprep.subr.mxu0 0.0
        %1385 = vmatpush2.msra.mxu0 0.0
        %1386 = vmatprep.subr.mxu0 0.0
        %1387 = vmatpush2.msra.mxu0 0.0
        %1388 = vmatprep.subr.mxu0 0.0
        %1389 = vmatpush2.msra.mxu0 0.0
        %1390 = vmatprep.subr.mxu0 0.0
        %1391 = vmatpush2.msra.mxu0 0.0
        %1392 = vmatprep.subr.mxu0 0.0
        %1393 = vmatpush2.msra.mxu0 0.0
        %1394 = vmatprep.subr.mxu0 0.0
        %1395 = vmatpush2.msra.mxu0 0.0
        %1396 = vmatprep.subr.mxu0 0.0
        %1397 = vmatpush2.msra.mxu0 0.0
        %1398 = vmatprep.subr.mxu0 0.0
        %1399 = vmatpush2.msra.mxu0 0.0
        %1400 = vmatprep.subr.mxu0 0.0
        %1401 = vmatpush2.msra.mxu0 0.0
        %1402 = vmatprep.subr.mxu0 0.0
        %1403 = vmatpush2.msra.mxu0 0.0
        %1404 = vmatprep.subr.mxu0 0.0
        %1405 = vmatpush2.msra.mxu0 0.0
        %1406 = vmatprep.subr.mxu0 0.0
        %1407 = vmatpush2.msra.mxu0 0.0
        %1408 = vmatprep.subr.mxu0 0.0
        %1409 = vmatpush2.msra.mxu0 0.0
        %1410 = vmatprep.subr.mxu0 0.0
        %1411 = vmatpush2.msra.mxu0 0.0
        %1412 = vmatprep.subr.mxu0 0.0
        %1413 = vmatpush2.msra.mxu0 0.0
        %1414 = vmatprep.subr.mxu0 0.0
        %1415 = vmatpush2.msra.mxu0 0.0
        %1416 = vmatprep.mubr.f32.mxu0 0.0
        %v1417 = vand.u32 %v922, 4294901760
        %1418 = vmatmul.mubr.f32.gmra.mxu0 %v1417
        %v1419 = vpop.f32.mrf.mxu0
        %v1420 = vadd.f32 %v1341, %v1419
        %v1421 = vpop.f32.mrf.mxu0
        %1422 = vmatprep.mubr.f32.mxu0 0.0
        %v1423 = vand.u32 %v925, 4294901760
        %1424 = vmatmul.mubr.f32.gmra.mxu0 %v1423
        %v1425 = vpop.f32.mrf.mxu0
        %v1426 = vadd.f32 %v1347, %v1425
        %v1427 = vpop.f32.mrf.mxu0
        %1428 = vdwg.mxu0
        %v1429 = vsub.f32 %v216, %v1420
        %v1430 = vsub.f32 %v217, %v1426
        %v1431 = vand.u32 2147483647, %v1429
        %v1432 = vand.u32 2147483647, %v1430
        %v1433 = vmul.f32 %v1431, 255.0
        %v1434 = vmul.f32 %v1432, 255.0
        %vm1435 = vcmp.gt.f32.partialorder %v1433, 10.0
        %vm1436 = vcmp.gt.f32.partialorder %v1434, 10.0
        %v1437 = vsel %vm1435, 1, 0
        %v1438 = vsel %vm1436, 1, 0
        %v1439 = vcvt.s32.f32 %v1437
        %v1440 = vcvt.s32.f32 %v1438
        %1441 = vmatprep.subr.mxu0 0.0
        %v1442 = vand.u32 %v235, 4294901760
        %1443 = vmatpush1.msra.mxu0 %v1442
        %1444 = vmatprep.subr.mxu0 0.0
        %v1445 = vand.u32 %v234, 4294901760
        %1446 = vmatpush1.msra.mxu0 %v1445
        %1447 = vmatprep.subr.mxu0 0.0
        %v1448 = vand.u32 %v233, 4294901760
        %1449 = vmatpush1.msra.mxu0 %v1448
        %1450 = vmatprep.subr.mxu0 0.0
        %v1451 = vand.u32 %v232, 4294901760
        %1452 = vmatpush1.msra.mxu0 %v1451
        %1453 = vmatprep.subr.mxu0 0.0
        %v1454 = vand.u32 %v231, 4294901760
        %1455 = vmatpush1.msra.mxu0 %v1454
        %1456 = vmatprep.subr.mxu0 0.0
        %v1457 = vand.u32 %v230, 4294901760
        %1458 = vmatpush1.msra.mxu0 %v1457
        %1459 = vmatprep.subr.mxu0 0.0
        %v1460 = vand.u32 %v229, 4294901760
        %1461 = vmatpush1.msra.mxu0 %v1460
        %1462 = vmatprep.subr.mxu0 0.0
        %v1463 = vand.u32 %v228, 4294901760
        %1464 = vmatpush1.msra.mxu0 %v1463
        %1465 = vmatprep.subr.mxu0 0.0
        %v1466 = vand.u32 %v227, 4294901760
        %1467 = vmatpush1.msra.mxu0 %v1466
        %1468 = vmatprep.subr.mxu0 0.0
        %v1469 = vand.u32 %v226, 4294901760
        %1470 = vmatpush1.msra.mxu0 %v1469
        %1471 = vmatprep.subr.mxu0 0.0
        %v1472 = vand.u32 %v225, 4294901760
        %1473 = vmatpush1.msra.mxu0 %v1472
        %1474 = vmatprep.subr.mxu0 0.0
        %v1475 = vand.u32 %v224, 4294901760
        %1476 = vmatpush1.msra.mxu0 %v1475
        %1477 = vmatprep.subr.mxu0 0.0
        %v1478 = vand.u32 %v223, 4294901760
        %1479 = vmatpush1.msra.mxu0 %v1478
        %1480 = vmatprep.subr.mxu0 0.0
        %v1481 = vand.u32 %v222, 4294901760
        %1482 = vmatpush1.msra.mxu0 %v1481
        %1483 = vmatprep.subr.mxu0 0.0
        %v1484 = vand.u32 %v221, 4294901760
        %1485 = vmatpush1.msra.mxu0 %v1484
        %1486 = vmatprep.subr.mxu0 0.0
        %v1487 = vand.u32 %v220, 4294901760
        %1488 = vmatpush1.msra.mxu0 %v1487
        %1489 = vmatprep.subr.mxu0 0.0
        %1490 = vmatpush2.msra.mxu0 0.0
        %1491 = vmatprep.subr.mxu0 0.0
        %1492 = vmatpush2.msra.mxu0 0.0
        %1493 = vmatprep.subr.mxu0 0.0
        %1494 = vmatpush2.msra.mxu0 0.0
        %1495 = vmatprep.subr.mxu0 0.0
        %1496 = vmatpush2.msra.mxu0 0.0
        %1497 = vmatprep.subr.mxu0 0.0
        %1498 = vmatpush2.msra.mxu0 0.0
        %1499 = vmatprep.subr.mxu0 0.0
        %1500 = vmatpush2.msra.mxu0 0.0
        %1501 = vmatprep.subr.mxu0 0.0
        %1502 = vmatpush2.msra.mxu0 0.0
        %1503 = vmatprep.subr.mxu0 0.0
        %1504 = vmatpush2.msra.mxu0 0.0
        %1505 = vmatprep.subr.mxu0 0.0
        %1506 = vmatpush2.msra.mxu0 0.0
        %1507 = vmatprep.subr.mxu0 0.0
        %1508 = vmatpush2.msra.mxu0 0.0
        %1509 = vmatprep.subr.mxu0 0.0
        %1510 = vmatpush2.msra.mxu0 0.0
        %1511 = vmatprep.subr.mxu0 0.0
        %1512 = vmatpush2.msra.mxu0 0.0
        %1513 = vmatprep.subr.mxu0 0.0
        %1514 = vmatpush2.msra.mxu0 0.0
        %1515 = vmatprep.subr.mxu0 0.0
        %1516 = vmatpush2.msra.mxu0 0.0
        %1517 = vmatprep.subr.mxu0 0.0
        %1518 = vmatpush2.msra.mxu0 0.0
        %1519 = vmatprep.subr.mxu0 0.0
        %1520 = vmatpush2.msra.mxu0 0.0
        %1521 = vmatprep.mubr.f32.mxu0 0.0
        %v1522 = vand.u32 %v1439, 4294901760
        %v1523 = vsub.f32 %v1439, %v1522
        %v1524 = vand.u32 %v1523, 4294901760
        %v1525 = vsub.f32 %v1523, %v1524
        %v1526 = vand.u32 %v1525, 4294901760
        %1527 = vmatmul.mubr.f32.gmra.mxu0 %v1526
        %v1528 = vpop.f32.mrf.mxu0
        %v1529 = vadd.f32 0.0, %v1528
        %v1530 = vpop.f32.mrf.mxu0
        %1531 = vmatprep.mubr.f32.mxu0 0.0
        %v1532 = vand.u32 %v1440, 4294901760
        %v1533 = vsub.f32 %v1440, %v1532
        %v1534 = vand.u32 %v1533, 4294901760
        %v1535 = vsub.f32 %v1533, %v1534
        %v1536 = vand.u32 %v1535, 4294901760
        %1537 = vmatmul.mubr.f32.gmra.mxu0 %v1536
        %v1538 = vpop.f32.mrf.mxu0
        %v1539 = vadd.f32 0.0, %v1538
        %v1540 = vpop.f32.mrf.mxu0
        %1541 = vdwg.mxu0
        %1542 = vmatprep.subr.mxu0 0.0
        %v1543 = vand.u32 %v235, 4294901760
        %v1544 = vsub.f32 %v235, %v1543
        %v1545 = vand.u32 %v1544, 4294901760
        %v1546 = vsub.f32 %v1544, %v1545
        %v1547 = vand.u32 %v1546, 4294901760
        %1548 = vmatpush1.msra.mxu0 %v1547
        %1549 = vmatprep.subr.mxu0 0.0
        %v1550 = vand.u32 %v234, 4294901760
        %v1551 = vsub.f32 %v234, %v1550
        %v1552 = vand.u32 %v1551, 4294901760
        %v1553 = vsub.f32 %v1551, %v1552
        %v1554 = vand.u32 %v1553, 4294901760
        %1555 = vmatpush1.msra.mxu0 %v1554
        %1556 = vmatprep.subr.mxu0 0.0
        %v1557 = vand.u32 %v233, 4294901760
        %v1558 = vsub.f32 %v233, %v1557
        %v1559 = vand.u32 %v1558, 4294901760
        %v1560 = vsub.f32 %v1558, %v1559
        %v1561 = vand.u32 %v1560, 4294901760
        %1562 = vmatpush1.msra.mxu0 %v1561
        %1563 = vmatprep.subr.mxu0 0.0
        %v1564 = vand.u32 %v232, 4294901760
        %v1565 = vsub.f32 %v232, %v1564
        %v1566 = vand.u32 %v1565, 4294901760
        %v1567 = vsub.f32 %v1565, %v1566
        %v1568 = vand.u32 %v1567, 4294901760
        %1569 = vmatpush1.msra.mxu0 %v1568
        %1570 = vmatprep.subr.mxu0 0.0
        %v1571 = vand.u32 %v231, 4294901760
        %v1572 = vsub.f32 %v231, %v1571
        %v1573 = vand.u32 %v1572, 4294901760
        %v1574 = vsub.f32 %v1572, %v1573
        %v1575 = vand.u32 %v1574, 4294901760
        %1576 = vmatpush1.msra.mxu0 %v1575
        %1577 = vmatprep.subr.mxu0 0.0
        %v1578 = vand.u32 %v230, 4294901760
        %v1579 = vsub.f32 %v230, %v1578
        %v1580 = vand.u32 %v1579, 4294901760
        %v1581 = vsub.f32 %v1579, %v1580
        %v1582 = vand.u32 %v1581, 4294901760
        %1583 = vmatpush1.msra.mxu0 %v1582
        %1584 = vmatprep.subr.mxu0 0.0
        %v1585 = vand.u32 %v229, 4294901760
        %v1586 = vsub.f32 %v229, %v1585
        %v1587 = vand.u32 %v1586, 4294901760
        %v1588 = vsub.f32 %v1586, %v1587
        %v1589 = vand.u32 %v1588, 4294901760
        %1590 = vmatpush1.msra.mxu0 %v1589
        %1591 = vmatprep.subr.mxu0 0.0
        %v1592 = vand.u32 %v228, 4294901760
        %v1593 = vsub.f32 %v228, %v1592
        %v1594 = vand.u32 %v1593, 4294901760
        %v1595 = vsub.f32 %v1593, %v1594
        %v1596 = vand.u32 %v1595, 4294901760
        %1597 = vmatpush1.msra.mxu0 %v1596
        %1598 = vmatprep.subr.mxu0 0.0
        %v1599 = vand.u32 %v227, 4294901760
        %v1600 = vsub.f32 %v227, %v1599
        %v1601 = vand.u32 %v1600, 4294901760
        %v1602 = vsub.f32 %v1600, %v1601
        %v1603 = vand.u32 %v1602, 4294901760
        %1604 = vmatpush1.msra.mxu0 %v1603
        %1605 = vmatprep.subr.mxu0 0.0
        %v1606 = vand.u32 %v226, 4294901760
        %v1607 = vsub.f32 %v226, %v1606
        %v1608 = vand.u32 %v1607, 4294901760
        %v1609 = vsub.f32 %v1607, %v1608
        %v1610 = vand.u32 %v1609, 4294901760
        %1611 = vmatpush1.msra.mxu0 %v1610
        %1612 = vmatprep.subr.mxu0 0.0
        %v1613 = vand.u32 %v225, 4294901760
        %v1614 = vsub.f32 %v225, %v1613
        %v1615 = vand.u32 %v1614, 4294901760
        %v1616 = vsub.f32 %v1614, %v1615
        %v1617 = vand.u32 %v1616, 4294901760
        %1618 = vmatpush1.msra.mxu0 %v1617
        %1619 = vmatprep.subr.mxu0 0.0
        %v1620 = vand.u32 %v224, 4294901760
        %v1621 = vsub.f32 %v224, %v1620
        %v1622 = vand.u32 %v1621, 4294901760
        %v1623 = vsub.f32 %v1621, %v1622
        %v1624 = vand.u32 %v1623, 4294901760
        %1625 = vmatpush1.msra.mxu0 %v1624
        %1626 = vmatprep.subr.mxu0 0.0
        %v1627 = vand.u32 %v223, 4294901760
        %v1628 = vsub.f32 %v223, %v1627
        %v1629 = vand.u32 %v1628, 4294901760
        %v1630 = vsub.f32 %v1628, %v1629
        %v1631 = vand.u32 %v1630, 4294901760
        %1632 = vmatpush1.msra.mxu0 %v1631
        %1633 = vmatprep.subr.mxu0 0.0
        %v1634 = vand.u32 %v222, 4294901760
        %v1635 = vsub.f32 %v222, %v1634
        %v1636 = vand.u32 %v1635, 4294901760
        %v1637 = vsub.f32 %v1635, %v1636
        %v1638 = vand.u32 %v1637, 4294901760
        %1639 = vmatpush1.msra.mxu0 %v1638
        %1640 = vmatprep.subr.mxu0 0.0
        %v1641 = vand.u32 %v221, 4294901760
        %v1642 = vsub.f32 %v221, %v1641
        %v1643 = vand.u32 %v1642, 4294901760
        %v1644 = vsub.f32 %v1642, %v1643
        %v1645 = vand.u32 %v1644, 4294901760
        %1646 = vmatpush1.msra.mxu0 %v1645
        %1647 = vmatprep.subr.mxu0 0.0
        %v1648 = vand.u32 %v220, 4294901760
        %v1649 = vsub.f32 %v220, %v1648
        %v1650 = vand.u32 %v1649, 4294901760
        %v1651 = vsub.f32 %v1649, %v1650
        %v1652 = vand.u32 %v1651, 4294901760
        %1653 = vmatpush1.msra.mxu0 %v1652
        %1654 = vmatprep.subr.mxu0 0.0
        %1655 = vmatpush2.msra.mxu0 0.0
        %1656 = vmatprep.subr.mxu0 0.0
        %1657 = vmatpush2.msra.mxu0 0.0
        %1658 = vmatprep.subr.mxu0 0.0
        %1659 = vmatpush2.msra.mxu0 0.0
        %1660 = vmatprep.subr.mxu0 0.0
        %1661 = vmatpush2.msra.mxu0 0.0
        %1662 = vmatprep.subr.mxu0 0.0
        %1663 = vmatpush2.msra.mxu0 0.0
        %1664 = vmatprep.subr.mxu0 0.0
        %1665 = vmatpush2.msra.mxu0 0.0
        %1666 = vmatprep.subr.mxu0 0.0
        %1667 = vmatpush2.msra.mxu0 0.0
        %1668 = vmatprep.subr.mxu0 0.0
        %1669 = vmatpush2.msra.mxu0 0.0
        %1670 = vmatprep.subr.mxu0 0.0
        %1671 = vmatpush2.msra.mxu0 0.0
        %1672 = vmatprep.subr.mxu0 0.0
        %1673 = vmatpush2.msra.mxu0 0.0
        %1674 = vmatprep.subr.mxu0 0.0
        %1675 = vmatpush2.msra.mxu0 0.0
        %1676 = vmatprep.subr.mxu0 0.0
        %1677 = vmatpush2.msra.mxu0 0.0
        %1678 = vmatprep.subr.mxu0 0.0
        %1679 = vmatpush2.msra.mxu0 0.0
        %1680 = vmatprep.subr.mxu0 0.0
        %1681 = vmatpush2.msra.mxu0 0.0
        %1682 = vmatprep.subr.mxu0 0.0
        %1683 = vmatpush2.msra.mxu0 0.0
        %1684 = vmatprep.subr.mxu0 0.0
        %1685 = vmatpush2.msra.mxu0 0.0
        %1686 = vmatprep.mubr.f32.mxu0 0.0
        %v1687 = vand.u32 %v1439, 4294901760
        %1688 = vmatmul.mubr.f32.gmra.mxu0 %v1687
        %v1689 = vpop.f32.mrf.mxu0
        %v1690 = vadd.f32 %v1529, %v1689
        %v1691 = vpop.f32.mrf.mxu0
        %1692 = vmatprep.mubr.f32.mxu0 0.0
        %v1693 = vand.u32 %v1440, 4294901760
        %1694 = vmatmul.mubr.f32.gmra.mxu0 %v1693
        %v1695 = vpop.f32.mrf.mxu0
        %v1696 = vadd.f32 %v1539, %v1695
        %v1697 = vpop.f32.mrf.mxu0
        %1698 = vdwg.mxu0
        %1699 = vmatprep.subr.mxu0 0.0
        %v1700 = vand.u32 %v235, 4294901760
        %v1701 = vsub.f32 %v235, %v1700
        %1702 = vmatpush1.msra.mxu0 %v1701
        %1703 = vmatprep.subr.mxu0 0.0
        %v1704 = vand.u32 %v234, 4294901760
        %v1705 = vsub.f32 %v234, %v1704
        %1706 = vmatpush1.msra.mxu0 %v1705
        %1707 = vmatprep.subr.mxu0 0.0
        %v1708 = vand.u32 %v233, 4294901760
        %v1709 = vsub.f32 %v233, %v1708
        %1710 = vmatpush1.msra.mxu0 %v1709
        %1711 = vmatprep.subr.mxu0 0.0
        %v1712 = vand.u32 %v232, 4294901760
        %v1713 = vsub.f32 %v232, %v1712
        %1714 = vmatpush1.msra.mxu0 %v1713
        %1715 = vmatprep.subr.mxu0 0.0
        %v1716 = vand.u32 %v231, 4294901760
        %v1717 = vsub.f32 %v231, %v1716
        %1718 = vmatpush1.msra.mxu0 %v1717
        %1719 = vmatprep.subr.mxu0 0.0
        %v1720 = vand.u32 %v230, 4294901760
        %v1721 = vsub.f32 %v230, %v1720
        %1722 = vmatpush1.msra.mxu0 %v1721
        %1723 = vmatprep.subr.mxu0 0.0
        %v1724 = vand.u32 %v229, 4294901760
        %v1725 = vsub.f32 %v229, %v1724
        %1726 = vmatpush1.msra.mxu0 %v1725
        %1727 = vmatprep.subr.mxu0 0.0
        %v1728 = vand.u32 %v228, 4294901760
        %v1729 = vsub.f32 %v228, %v1728
        %1730 = vmatpush1.msra.mxu0 %v1729
        %1731 = vmatprep.subr.mxu0 0.0
        %v1732 = vand.u32 %v227, 4294901760
        %v1733 = vsub.f32 %v227, %v1732
        %1734 = vmatpush1.msra.mxu0 %v1733
        %1735 = vmatprep.subr.mxu0 0.0
        %v1736 = vand.u32 %v226, 4294901760
        %v1737 = vsub.f32 %v226, %v1736
        %1738 = vmatpush1.msra.mxu0 %v1737
        %1739 = vmatprep.subr.mxu0 0.0
        %v1740 = vand.u32 %v225, 4294901760
        %v1741 = vsub.f32 %v225, %v1740
        %1742 = vmatpush1.msra.mxu0 %v1741
        %1743 = vmatprep.subr.mxu0 0.0
        %v1744 = vand.u32 %v224, 4294901760
        %v1745 = vsub.f32 %v224, %v1744
        %1746 = vmatpush1.msra.mxu0 %v1745
        %1747 = vmatprep.subr.mxu0 0.0
        %v1748 = vand.u32 %v223, 4294901760
        %v1749 = vsub.f32 %v223, %v1748
        %1750 = vmatpush1.msra.mxu0 %v1749
        %1751 = vmatprep.subr.mxu0 0.0
        %v1752 = vand.u32 %v222, 4294901760
        %v1753 = vsub.f32 %v222, %v1752
        %1754 = vmatpush1.msra.mxu0 %v1753
        %1755 = vmatprep.subr.mxu0 0.0
        %v1756 = vand.u32 %v221, 4294901760
        %v1757 = vsub.f32 %v221, %v1756
        %1758 = vmatpush1.msra.mxu0 %v1757
        %1759 = vmatprep.subr.mxu0 0.0
        %v1760 = vand.u32 %v220, 4294901760
        %v1761 = vsub.f32 %v220, %v1760
        %1762 = vmatpush1.msra.mxu0 %v1761
        %1763 = vmatprep.subr.mxu0 0.0
        %1764 = vmatpush2.msra.mxu0 0.0
        %1765 = vmatprep.subr.mxu0 0.0
        %1766 = vmatpush2.msra.mxu0 0.0
        %1767 = vmatprep.subr.mxu0 0.0
        %1768 = vmatpush2.msra.mxu0 0.0
        %1769 = vmatprep.subr.mxu0 0.0
        %1770 = vmatpush2.msra.mxu0 0.0
        %1771 = vmatprep.subr.mxu0 0.0
        %1772 = vmatpush2.msra.mxu0 0.0
        %1773 = vmatprep.subr.mxu0 0.0
        %1774 = vmatpush2.msra.mxu0 0.0
        %1775 = vmatprep.subr.mxu0 0.0
        %1776 = vmatpush2.msra.mxu0 0.0
        %1777 = vmatprep.subr.mxu0 0.0
        %1778 = vmatpush2.msra.mxu0 0.0
        %1779 = vmatprep.subr.mxu0 0.0
        %1780 = vmatpush2.msra.mxu0 0.0
        %1781 = vmatprep.subr.mxu0 0.0
        %1782 = vmatpush2.msra.mxu0 0.0
        %1783 = vmatprep.subr.mxu0 0.0
        %1784 = vmatpush2.msra.mxu0 0.0
        %1785 = vmatprep.subr.mxu0 0.0
        %1786 = vmatpush2.msra.mxu0 0.0
        %1787 = vmatprep.subr.mxu0 0.0
        %1788 = vmatpush2.msra.mxu0 0.0
        %1789 = vmatprep.subr.mxu0 0.0
        %1790 = vmatpush2.msra.mxu0 0.0
        %1791 = vmatprep.subr.mxu0 0.0
        %1792 = vmatpush2.msra.mxu0 0.0
        %1793 = vmatprep.subr.mxu0 0.0
        %1794 = vmatpush2.msra.mxu0 0.0
        %1795 = vmatprep.mubr.f32.mxu0 0.0
        %v1796 = vand.u32 %v1439, 4294901760
        %v1797 = vsub.f32 %v1439, %v1796
        %1798 = vmatmul.mubr.f32.gmra.mxu0 %v1797
        %v1799 = vpop.f32.mrf.mxu0
        %v1800 = vadd.f32 %v1690, %v1799
        %v1801 = vpop.f32.mrf.mxu0
        %1802 = vmatprep.mubr.f32.mxu0 0.0
        %v1803 = vand.u32 %v1440, 4294901760
        %v1804 = vsub.f32 %v1440, %v1803
        %1805 = vmatmul.mubr.f32.gmra.mxu0 %v1804
        %v1806 = vpop.f32.mrf.mxu0
        %v1807 = vadd.f32 %v1696, %v1806
        %v1808 = vpop.f32.mrf.mxu0
        %1809 = vdwg.mxu0
        %1810 = vmatprep.subr.mxu0 0.0
        %v1811 = vand.u32 %v235, 4294901760
        %1812 = vmatpush1.msra.mxu0 %v1811
        %1813 = vmatprep.subr.mxu0 0.0
        %v1814 = vand.u32 %v234, 4294901760
        %1815 = vmatpush1.msra.mxu0 %v1814
        %1816 = vmatprep.subr.mxu0 0.0
        %v1817 = vand.u32 %v233, 4294901760
        %1818 = vmatpush1.msra.mxu0 %v1817
        %1819 = vmatprep.subr.mxu0 0.0
        %v1820 = vand.u32 %v232, 4294901760
        %1821 = vmatpush1.msra.mxu0 %v1820
        %1822 = vmatprep.subr.mxu0 0.0
        %v1823 = vand.u32 %v231, 4294901760
        %1824 = vmatpush1.msra.mxu0 %v1823
        %1825 = vmatprep.subr.mxu0 0.0
        %v1826 = vand.u32 %v230, 4294901760
        %1827 = vmatpush1.msra.mxu0 %v1826
        %1828 = vmatprep.subr.mxu0 0.0
        %v1829 = vand.u32 %v229, 4294901760
        %1830 = vmatpush1.msra.mxu0 %v1829
        %1831 = vmatprep.subr.mxu0 0.0
        %v1832 = vand.u32 %v228, 4294901760
        %1833 = vmatpush1.msra.mxu0 %v1832
        %1834 = vmatprep.subr.mxu0 0.0
        %v1835 = vand.u32 %v227, 4294901760
        %1836 = vmatpush1.msra.mxu0 %v1835
        %1837 = vmatprep.subr.mxu0 0.0
        %v1838 = vand.u32 %v226, 4294901760
        %1839 = vmatpush1.msra.mxu0 %v1838
        %1840 = vmatprep.subr.mxu0 0.0
        %v1841 = vand.u32 %v225, 4294901760
        %1842 = vmatpush1.msra.mxu0 %v1841
        %1843 = vmatprep.subr.mxu0 0.0
        %v1844 = vand.u32 %v224, 4294901760
        %1845 = vmatpush1.msra.mxu0 %v1844
        %1846 = vmatprep.subr.mxu0 0.0
        %v1847 = vand.u32 %v223, 4294901760
        %1848 = vmatpush1.msra.mxu0 %v1847
        %1849 = vmatprep.subr.mxu0 0.0
        %v1850 = vand.u32 %v222, 4294901760
        %1851 = vmatpush1.msra.mxu0 %v1850
        %1852 = vmatprep.subr.mxu0 0.0
        %v1853 = vand.u32 %v221, 4294901760
        %1854 = vmatpush1.msra.mxu0 %v1853
        %1855 = vmatprep.subr.mxu0 0.0
        %v1856 = vand.u32 %v220, 4294901760
        %1857 = vmatpush1.msra.mxu0 %v1856
        %1858 = vmatprep.subr.mxu0 0.0
        %1859 = vmatpush2.msra.mxu0 0.0
        %1860 = vmatprep.subr.mxu0 0.0
        %1861 = vmatpush2.msra.mxu0 0.0
        %1862 = vmatprep.subr.mxu0 0.0
        %1863 = vmatpush2.msra.mxu0 0.0
        %1864 = vmatprep.subr.mxu0 0.0
        %1865 = vmatpush2.msra.mxu0 0.0
        %1866 = vmatprep.subr.mxu0 0.0
        %1867 = vmatpush2.msra.mxu0 0.0
        %1868 = vmatprep.subr.mxu0 0.0
        %1869 = vmatpush2.msra.mxu0 0.0
        %1870 = vmatprep.subr.mxu0 0.0
        %1871 = vmatpush2.msra.mxu0 0.0
        %1872 = vmatprep.subr.mxu0 0.0
        %1873 = vmatpush2.msra.mxu0 0.0
        %1874 = vmatprep.subr.mxu0 0.0
        %1875 = vmatpush2.msra.mxu0 0.0
        %1876 = vmatprep.subr.mxu0 0.0
        %1877 = vmatpush2.msra.mxu0 0.0
        %1878 = vmatprep.subr.mxu0 0.0
        %1879 = vmatpush2.msra.mxu0 0.0
        %1880 = vmatprep.subr.mxu0 0.0
        %1881 = vmatpush2.msra.mxu0 0.0
        %1882 = vmatprep.subr.mxu0 0.0
        %1883 = vmatpush2.msra.mxu0 0.0
        %1884 = vmatprep.subr.mxu0 0.0
        %1885 = vmatpush2.msra.mxu0 0.0
        %1886 = vmatprep.subr.mxu0 0.0
        %1887 = vmatpush2.msra.mxu0 0.0
        %1888 = vmatprep.subr.mxu0 0.0
        %1889 = vmatpush2.msra.mxu0 0.0
        %1890 = vmatprep.mubr.f32.mxu0 0.0
        %v1891 = vand.u32 %v1439, 4294901760
        %v1892 = vsub.f32 %v1439, %v1891
        %v1893 = vand.u32 %v1892, 4294901760
        %1894 = vmatmul.mubr.f32.gmra.mxu0 %v1893
        %v1895 = vpop.f32.mrf.mxu0
        %v1896 = vadd.f32 %v1800, %v1895
        %v1897 = vpop.f32.mrf.mxu0
        %1898 = vmatprep.mubr.f32.mxu0 0.0
        %v1899 = vand.u32 %v1440, 4294901760
        %v1900 = vsub.f32 %v1440, %v1899
        %v1901 = vand.u32 %v1900, 4294901760
        %1902 = vmatmul.mubr.f32.gmra.mxu0 %v1901
        %v1903 = vpop.f32.mrf.mxu0
        %v1904 = vadd.f32 %v1807, %v1903
        %v1905 = vpop.f32.mrf.mxu0
        %1906 = vdwg.mxu0
        %1907 = vmatprep.subr.mxu0 0.0
        %v1908 = vand.u32 %v235, 4294901760
        %v1909 = vsub.f32 %v235, %v1908
        %v1910 = vand.u32 %v1909, 4294901760
        %1911 = vmatpush1.msra.mxu0 %v1910
        %1912 = vmatprep.subr.mxu0 0.0
        %v1913 = vand.u32 %v234, 4294901760
        %v1914 = vsub.f32 %v234, %v1913
        %v1915 = vand.u32 %v1914, 4294901760
        %1916 = vmatpush1.msra.mxu0 %v1915
        %1917 = vmatprep.subr.mxu0 0.0
        %v1918 = vand.u32 %v233, 4294901760
        %v1919 = vsub.f32 %v233, %v1918
        %v1920 = vand.u32 %v1919, 4294901760
        %1921 = vmatpush1.msra.mxu0 %v1920
        %1922 = vmatprep.subr.mxu0 0.0
        %v1923 = vand.u32 %v232, 4294901760
        %v1924 = vsub.f32 %v232, %v1923
        %v1925 = vand.u32 %v1924, 4294901760
        %1926 = vmatpush1.msra.mxu0 %v1925
        %1927 = vmatprep.subr.mxu0 0.0
        %v1928 = vand.u32 %v231, 4294901760
        %v1929 = vsub.f32 %v231, %v1928
        %v1930 = vand.u32 %v1929, 4294901760
        %1931 = vmatpush1.msra.mxu0 %v1930
        %1932 = vmatprep.subr.mxu0 0.0
        %v1933 = vand.u32 %v230, 4294901760
        %v1934 = vsub.f32 %v230, %v1933
        %v1935 = vand.u32 %v1934, 4294901760
        %1936 = vmatpush1.msra.mxu0 %v1935
        %1937 = vmatprep.subr.mxu0 0.0
        %v1938 = vand.u32 %v229, 4294901760
        %v1939 = vsub.f32 %v229, %v1938
        %v1940 = vand.u32 %v1939, 4294901760
        %1941 = vmatpush1.msra.mxu0 %v1940
        %1942 = vmatprep.subr.mxu0 0.0
        %v1943 = vand.u32 %v228, 4294901760
        %v1944 = vsub.f32 %v228, %v1943
        %v1945 = vand.u32 %v1944, 4294901760
        %1946 = vmatpush1.msra.mxu0 %v1945
        %1947 = vmatprep.subr.mxu0 0.0
        %v1948 = vand.u32 %v227, 4294901760
        %v1949 = vsub.f32 %v227, %v1948
        %v1950 = vand.u32 %v1949, 4294901760
        %1951 = vmatpush1.msra.mxu0 %v1950
        %1952 = vmatprep.subr.mxu0 0.0
        %v1953 = vand.u32 %v226, 4294901760
        %v1954 = vsub.f32 %v226, %v1953
        %v1955 = vand.u32 %v1954, 4294901760
        %1956 = vmatpush1.msra.mxu0 %v1955
        %1957 = vmatprep.subr.mxu0 0.0
        %v1958 = vand.u32 %v225, 4294901760
        %v1959 = vsub.f32 %v225, %v1958
        %v1960 = vand.u32 %v1959, 4294901760
        %1961 = vmatpush1.msra.mxu0 %v1960
        %1962 = vmatprep.subr.mxu0 0.0
        %v1963 = vand.u32 %v224, 4294901760
        %v1964 = vsub.f32 %v224, %v1963
        %v1965 = vand.u32 %v1964, 4294901760
        %1966 = vmatpush1.msra.mxu0 %v1965
        %1967 = vmatprep.subr.mxu0 0.0
        %v1968 = vand.u32 %v223, 4294901760
        %v1969 = vsub.f32 %v223, %v1968
        %v1970 = vand.u32 %v1969, 4294901760
        %1971 = vmatpush1.msra.mxu0 %v1970
        %1972 = vmatprep.subr.mxu0 0.0
        %v1973 = vand.u32 %v222, 4294901760
        %v1974 = vsub.f32 %v222, %v1973
        %v1975 = vand.u32 %v1974, 4294901760
        %1976 = vmatpush1.msra.mxu0 %v1975
        %1977 = vmatprep.subr.mxu0 0.0
        %v1978 = vand.u32 %v221, 4294901760
        %v1979 = vsub.f32 %v221, %v1978
        %v1980 = vand.u32 %v1979, 4294901760
        %1981 = vmatpush1.msra.mxu0 %v1980
        %1982 = vmatprep.subr.mxu0 0.0
        %v1983 = vand.u32 %v220, 4294901760
        %v1984 = vsub.f32 %v220, %v1983
        %v1985 = vand.u32 %v1984, 4294901760
        %1986 = vmatpush1.msra.mxu0 %v1985
        %1987 = vmatprep.subr.mxu0 0.0
        %1988 = vmatpush2.msra.mxu0 0.0
        %1989 = vmatprep.subr.mxu0 0.0
        %1990 = vmatpush2.msra.mxu0 0.0
        %1991 = vmatprep.subr.mxu0 0.0
        %1992 = vmatpush2.msra.mxu0 0.0
        %1993 = vmatprep.subr.mxu0 0.0
        %1994 = vmatpush2.msra.mxu0 0.0
        %1995 = vmatprep.subr.mxu0 0.0
        %1996 = vmatpush2.msra.mxu0 0.0
        %1997 = vmatprep.subr.mxu0 0.0
        %1998 = vmatpush2.msra.mxu0 0.0
        %1999 = vmatprep.subr.mxu0 0.0
        %2000 = vmatpush2.msra.mxu0 0.0
        %2001 = vmatprep.subr.mxu0 0.0
        %2002 = vmatpush2.msra.mxu0 0.0
        %2003 = vmatprep.subr.mxu0 0.0
        %2004 = vmatpush2.msra.mxu0 0.0
        %2005 = vmatprep.subr.mxu0 0.0
        %2006 = vmatpush2.msra.mxu0 0.0
        %2007 = vmatprep.subr.mxu0 0.0
        %2008 = vmatpush2.msra.mxu0 0.0
        %2009 = vmatprep.subr.mxu0 0.0
        %2010 = vmatpush2.msra.mxu0 0.0
        %2011 = vmatprep.subr.mxu0 0.0
        %2012 = vmatpush2.msra.mxu0 0.0
        %2013 = vmatprep.subr.mxu0 0.0
        %2014 = vmatpush2.msra.mxu0 0.0
        %2015 = vmatprep.subr.mxu0 0.0
        %2016 = vmatpush2.msra.mxu0 0.0
        %2017 = vmatprep.subr.mxu0 0.0
        %2018 = vmatpush2.msra.mxu0 0.0
        %2019 = vmatprep.mubr.f32.mxu0 0.0
        %v2020 = vand.u32 %v1439, 4294901760
        %2021 = vmatmul.mubr.f32.gmra.mxu0 %v2020
        %v2022 = vpop.f32.mrf.mxu0
        %v2023 = vadd.f32 %v1896, %v2022
        %v2024 = vpop.f32.mrf.mxu0
        %2025 = vmatprep.mubr.f32.mxu0 0.0
        %v2026 = vand.u32 %v1440, 4294901760
        %2027 = vmatmul.mubr.f32.gmra.mxu0 %v2026
        %v2028 = vpop.f32.mrf.mxu0
        %v2029 = vadd.f32 %v1904, %v2028
        %v2030 = vpop.f32.mrf.mxu0
        %2031 = vdwg.mxu0
        %2032 = vmatprep.subr.mxu0 0.0
        %v2033 = vand.u32 %v235, 4294901760
        %2034 = vmatpush1.msra.mxu0 %v2033
        %2035 = vmatprep.subr.mxu0 0.0
        %v2036 = vand.u32 %v234, 4294901760
        %2037 = vmatpush1.msra.mxu0 %v2036
        %2038 = vmatprep.subr.mxu0 0.0
        %v2039 = vand.u32 %v233, 4294901760
        %2040 = vmatpush1.msra.mxu0 %v2039
        %2041 = vmatprep.subr.mxu0 0.0
        %v2042 = vand.u32 %v232, 4294901760
        %2043 = vmatpush1.msra.mxu0 %v2042
        %2044 = vmatprep.subr.mxu0 0.0
        %v2045 = vand.u32 %v231, 4294901760
        %2046 = vmatpush1.msra.mxu0 %v2045
        %2047 = vmatprep.subr.mxu0 0.0
        %v2048 = vand.u32 %v230, 4294901760
        %2049 = vmatpush1.msra.mxu0 %v2048
        %2050 = vmatprep.subr.mxu0 0.0
        %v2051 = vand.u32 %v229, 4294901760
        %2052 = vmatpush1.msra.mxu0 %v2051
        %2053 = vmatprep.subr.mxu0 0.0
        %v2054 = vand.u32 %v228, 4294901760
        %2055 = vmatpush1.msra.mxu0 %v2054
        %2056 = vmatprep.subr.mxu0 0.0
        %v2057 = vand.u32 %v227, 4294901760
        %2058 = vmatpush1.msra.mxu0 %v2057
        %2059 = vmatprep.subr.mxu0 0.0
        %v2060 = vand.u32 %v226, 4294901760
        %2061 = vmatpush1.msra.mxu0 %v2060
        %2062 = vmatprep.subr.mxu0 0.0
        %v2063 = vand.u32 %v225, 4294901760
        %2064 = vmatpush1.msra.mxu0 %v2063
        %2065 = vmatprep.subr.mxu0 0.0
        %v2066 = vand.u32 %v224, 4294901760
        %2067 = vmatpush1.msra.mxu0 %v2066
        %2068 = vmatprep.subr.mxu0 0.0
        %v2069 = vand.u32 %v223, 4294901760
        %2070 = vmatpush1.msra.mxu0 %v2069
        %2071 = vmatprep.subr.mxu0 0.0
        %v2072 = vand.u32 %v222, 4294901760
        %2073 = vmatpush1.msra.mxu0 %v2072
        %2074 = vmatprep.subr.mxu0 0.0
        %v2075 = vand.u32 %v221, 4294901760
        %2076 = vmatpush1.msra.mxu0 %v2075
        %2077 = vmatprep.subr.mxu0 0.0
        %v2078 = vand.u32 %v220, 4294901760
        %2079 = vmatpush1.msra.mxu0 %v2078
        %2080 = vmatprep.subr.mxu0 0.0
        %2081 = vmatpush2.msra.mxu0 0.0
        %2082 = vmatprep.subr.mxu0 0.0
        %2083 = vmatpush2.msra.mxu0 0.0
        %2084 = vmatprep.subr.mxu0 0.0
        %2085 = vmatpush2.msra.mxu0 0.0
        %2086 = vmatprep.subr.mxu0 0.0
        %2087 = vmatpush2.msra.mxu0 0.0
        %2088 = vmatprep.subr.mxu0 0.0
        %2089 = vmatpush2.msra.mxu0 0.0
        %2090 = vmatprep.subr.mxu0 0.0
        %2091 = vmatpush2.msra.mxu0 0.0
        %2092 = vmatprep.subr.mxu0 0.0
        %2093 = vmatpush2.msra.mxu0 0.0
        %2094 = vmatprep.subr.mxu0 0.0
        %2095 = vmatpush2.msra.mxu0 0.0
        %2096 = vmatprep.subr.mxu0 0.0
        %2097 = vmatpush2.msra.mxu0 0.0
        %2098 = vmatprep.subr.mxu0 0.0
        %2099 = vmatpush2.msra.mxu0 0.0
        %2100 = vmatprep.subr.mxu0 0.0
        %2101 = vmatpush2.msra.mxu0 0.0
        %2102 = vmatprep.subr.mxu0 0.0
        %2103 = vmatpush2.msra.mxu0 0.0
        %2104 = vmatprep.subr.mxu0 0.0
        %2105 = vmatpush2.msra.mxu0 0.0
        %2106 = vmatprep.subr.mxu0 0.0
        %2107 = vmatpush2.msra.mxu0 0.0
        %2108 = vmatprep.subr.mxu0 0.0
        %2109 = vmatpush2.msra.mxu0 0.0
        %2110 = vmatprep.subr.mxu0 0.0
        %2111 = vmatpush2.msra.mxu0 0.0
        %2112 = vmatprep.mubr.f32.mxu0 0.0
        %v2113 = vand.u32 %v1439, 4294901760
        %2114 = vmatmul.mubr.f32.gmra.mxu0 %v2113
        %v2115 = vpop.f32.mrf.mxu0
        %v2116 = vadd.f32 %v2023, %v2115
        %v2117 = vpop.f32.mrf.mxu0
        %2118 = vmatprep.mubr.f32.mxu0 0.0
        %v2119 = vand.u32 %v1440, 4294901760
        %2120 = vmatmul.mubr.f32.gmra.mxu0 %v2119
        %v2121 = vpop.f32.mrf.mxu0
        %v2122 = vadd.f32 %v2029, %v2121
        %v2123 = vpop.f32.mrf.mxu0
        %2124 = vdwg.mxu0
        %2125 = vmatprep.subr.mxu0 0.0
        %2126 = vmatpush1.msra.mxu0 0.0
        %2127 = vmatprep.subr.mxu0 0.0
        %2128 = vmatpush1.msra.mxu0 0.0
        %2129 = vmatprep.subr.mxu0 0.0
        %2130 = vmatpush1.msra.mxu0 0.0
        %2131 = vmatprep.subr.mxu0 0.0
        %2132 = vmatpush1.msra.mxu0 0.0
        %2133 = vmatprep.subr.mxu0 0.0
        %2134 = vmatpush1.msra.mxu0 0.0
        %2135 = vmatprep.subr.mxu0 0.0
        %2136 = vmatpush1.msra.mxu0 0.0
        %2137 = vmatprep.subr.mxu0 0.0
        %2138 = vmatpush1.msra.mxu0 0.0
        %2139 = vmatprep.subr.mxu0 0.0
        %2140 = vmatpush1.msra.mxu0 0.0
        %2141 = vmatprep.subr.mxu0 0.0
        %2142 = vmatpush1.msra.mxu0 0.0
        %2143 = vmatprep.subr.mxu0 0.0
        %2144 = vmatpush1.msra.mxu0 0.0
        %2145 = vmatprep.subr.mxu0 0.0
        %2146 = vmatpush1.msra.mxu0 0.0
        %2147 = vmatprep.subr.mxu0 0.0
        %2148 = vmatpush1.msra.mxu0 0.0
        %2149 = vmatprep.subr.mxu0 0.0
        %2150 = vmatpush1.msra.mxu0 0.0
        %2151 = vmatprep.subr.mxu0 0.0
        %2152 = vmatpush1.msra.mxu0 0.0
        %2153 = vmatprep.subr.mxu0 0.0
        %v2154 = vand.u32 %v2122, 4294901760
        %2155 = vmatpush1.msra.mxu0 %v2154
        %2156 = vmatprep.subr.mxu0 0.0
        %v2157 = vand.u32 %v2116, 4294901760
        %2158 = vmatpush1.msra.mxu0 %v2157
        %2159 = vmatprep.subr.mxu0 0.0
        %2160 = vmatpush2.msra.mxu0 0.0
        %2161 = vmatprep.subr.mxu0 0.0
        %2162 = vmatpush2.msra.mxu0 0.0
        %2163 = vmatprep.subr.mxu0 0.0
        %2164 = vmatpush2.msra.mxu0 0.0
        %2165 = vmatprep.subr.mxu0 0.0
        %2166 = vmatpush2.msra.mxu0 0.0
        %2167 = vmatprep.subr.mxu0 0.0
        %2168 = vmatpush2.msra.mxu0 0.0
        %2169 = vmatprep.subr.mxu0 0.0
        %2170 = vmatpush2.msra.mxu0 0.0
        %2171 = vmatprep.subr.mxu0 0.0
        %2172 = vmatpush2.msra.mxu0 0.0
        %2173 = vmatprep.subr.mxu0 0.0
        %2174 = vmatpush2.msra.mxu0 0.0
        %2175 = vmatprep.subr.mxu0 0.0
        %2176 = vmatpush2.msra.mxu0 0.0
        %2177 = vmatprep.subr.mxu0 0.0
        %2178 = vmatpush2.msra.mxu0 0.0
        %2179 = vmatprep.subr.mxu0 0.0
        %2180 = vmatpush2.msra.mxu0 0.0
        %2181 = vmatprep.subr.mxu0 0.0
        %2182 = vmatpush2.msra.mxu0 0.0
        %2183 = vmatprep.subr.mxu0 0.0
        %2184 = vmatpush2.msra.mxu0 0.0
        %2185 = vmatprep.subr.mxu0 0.0
        %2186 = vmatpush2.msra.mxu0 0.0
        %2187 = vmatprep.subr.mxu0 0.0
        %2188 = vmatpush2.msra.mxu0 0.0
        %2189 = vmatprep.subr.mxu0 0.0
        %2190 = vmatpush2.msra.mxu0 0.0
        %2191 = vmatprep.mubr.f32.mxu0 0.0
        %v2192 = vand.u32 %v922, 4294901760
        %v2193 = vsub.f32 %v922, %v2192
        %v2194 = vand.u32 %v2193, 4294901760
        %v2195 = vsub.f32 %v2193, %v2194
        %v2196 = vand.u32 %v2195, 4294901760
        %2197 = vmatmul.mubr.f32.gmra.mxu0 %v2196
        %v2198 = vpop.f32.mrf.mxu0
        %v2199 = vadd.f32 0.0, %v2198
        %v2200 = vpop.f32.mrf.mxu0
        %2201 = vmatprep.mubr.f32.mxu0 0.0
        %v2202 = vand.u32 %v925, 4294901760
        %v2203 = vsub.f32 %v925, %v2202
        %v2204 = vand.u32 %v2203, 4294901760
        %v2205 = vsub.f32 %v2203, %v2204
        %v2206 = vand.u32 %v2205, 4294901760
        %2207 = vmatmul.mubr.f32.gmra.mxu0 %v2206
        %v2208 = vpop.f32.mrf.mxu0
        %v2209 = vadd.f32 0.0, %v2208
        %v2210 = vpop.f32.mrf.mxu0
        %2211 = vdwg.mxu0
        %2212 = vmatprep.subr.mxu0 0.0
        %2213 = vmatpush1.msra.mxu0 0.0
        %2214 = vmatprep.subr.mxu0 0.0
        %2215 = vmatpush1.msra.mxu0 0.0
        %2216 = vmatprep.subr.mxu0 0.0
        %2217 = vmatpush1.msra.mxu0 0.0
        %2218 = vmatprep.subr.mxu0 0.0
        %2219 = vmatpush1.msra.mxu0 0.0
        %2220 = vmatprep.subr.mxu0 0.0
        %2221 = vmatpush1.msra.mxu0 0.0
        %2222 = vmatprep.subr.mxu0 0.0
        %2223 = vmatpush1.msra.mxu0 0.0
        %2224 = vmatprep.subr.mxu0 0.0
        %2225 = vmatpush1.msra.mxu0 0.0
        %2226 = vmatprep.subr.mxu0 0.0
        %2227 = vmatpush1.msra.mxu0 0.0
        %2228 = vmatprep.subr.mxu0 0.0
        %2229 = vmatpush1.msra.mxu0 0.0
        %2230 = vmatprep.subr.mxu0 0.0
        %2231 = vmatpush1.msra.mxu0 0.0
        %2232 = vmatprep.subr.mxu0 0.0
        %2233 = vmatpush1.msra.mxu0 0.0
        %2234 = vmatprep.subr.mxu0 0.0
        %2235 = vmatpush1.msra.mxu0 0.0
        %2236 = vmatprep.subr.mxu0 0.0
        %2237 = vmatpush1.msra.mxu0 0.0
        %2238 = vmatprep.subr.mxu0 0.0
        %2239 = vmatpush1.msra.mxu0 0.0
        %2240 = vmatprep.subr.mxu0 0.0
        %v2241 = vand.u32 %v2122, 4294901760
        %v2242 = vsub.f32 %v2122, %v2241
        %v2243 = vand.u32 %v2242, 4294901760
        %v2244 = vsub.f32 %v2242, %v2243
        %v2245 = vand.u32 %v2244, 4294901760
        %2246 = vmatpush1.msra.mxu0 %v2245
        %2247 = vmatprep.subr.mxu0 0.0
        %v2248 = vand.u32 %v2116, 4294901760
        %v2249 = vsub.f32 %v2116, %v2248
        %v2250 = vand.u32 %v2249, 4294901760
        %v2251 = vsub.f32 %v2249, %v2250
        %v2252 = vand.u32 %v2251, 4294901760
        %2253 = vmatpush1.msra.mxu0 %v2252
        %2254 = vmatprep.subr.mxu0 0.0
        %2255 = vmatpush2.msra.mxu0 0.0
        %2256 = vmatprep.subr.mxu0 0.0
        %2257 = vmatpush2.msra.mxu0 0.0
        %2258 = vmatprep.subr.mxu0 0.0
        %2259 = vmatpush2.msra.mxu0 0.0
        %2260 = vmatprep.subr.mxu0 0.0
        %2261 = vmatpush2.msra.mxu0 0.0
        %2262 = vmatprep.subr.mxu0 0.0
        %2263 = vmatpush2.msra.mxu0 0.0
        %2264 = vmatprep.subr.mxu0 0.0
        %2265 = vmatpush2.msra.mxu0 0.0
        %2266 = vmatprep.subr.mxu0 0.0
        %2267 = vmatpush2.msra.mxu0 0.0
        %2268 = vmatprep.subr.mxu0 0.0
        %2269 = vmatpush2.msra.mxu0 0.0
        %2270 = vmatprep.subr.mxu0 0.0
        %2271 = vmatpush2.msra.mxu0 0.0
        %2272 = vmatprep.subr.mxu0 0.0
        %2273 = vmatpush2.msra.mxu0 0.0
        %2274 = vmatprep.subr.mxu0 0.0
        %2275 = vmatpush2.msra.mxu0 0.0
        %2276 = vmatprep.subr.mxu0 0.0
        %2277 = vmatpush2.msra.mxu0 0.0
        %2278 = vmatprep.subr.mxu0 0.0
        %2279 = vmatpush2.msra.mxu0 0.0
        %2280 = vmatprep.subr.mxu0 0.0
        %2281 = vmatpush2.msra.mxu0 0.0
        %2282 = vmatprep.subr.mxu0 0.0
        %2283 = vmatpush2.msra.mxu0 0.0
        %2284 = vmatprep.subr.mxu0 0.0
        %2285 = vmatpush2.msra.mxu0 0.0
        %2286 = vmatprep.mubr.f32.mxu0 0.0
        %v2287 = vand.u32 %v922, 4294901760
        %2288 = vmatmul.mubr.f32.gmra.mxu0 %v2287
        %v2289 = vpop.f32.mrf.mxu0
        %v2290 = vadd.f32 %v2199, %v2289
        %v2291 = vpop.f32.mrf.mxu0
        %2292 = vmatprep.mubr.f32.mxu0 0.0
        %v2293 = vand.u32 %v925, 4294901760
        %2294 = vmatmul.mubr.f32.gmra.mxu0 %v2293
        %v2295 = vpop.f32.mrf.mxu0
        %v2296 = vadd.f32 %v2209, %v2295
        %v2297 = vpop.f32.mrf.mxu0
        %2298 = vdwg.mxu0
        %2299 = vmatprep.subr.mxu0 0.0
        %2300 = vmatpush1.msra.mxu0 0.0
        %2301 = vmatprep.subr.mxu0 0.0
        %2302 = vmatpush1.msra.mxu0 0.0
        %2303 = vmatprep.subr.mxu0 0.0
        %2304 = vmatpush1.msra.mxu0 0.0
        %2305 = vmatprep.subr.mxu0 0.0
        %2306 = vmatpush1.msra.mxu0 0.0
        %2307 = vmatprep.subr.mxu0 0.0
        %2308 = vmatpush1.msra.mxu0 0.0
        %2309 = vmatprep.subr.mxu0 0.0
        %2310 = vmatpush1.msra.mxu0 0.0
        %2311 = vmatprep.subr.mxu0 0.0
        %2312 = vmatpush1.msra.mxu0 0.0
        %2313 = vmatprep.subr.mxu0 0.0
        %2314 = vmatpush1.msra.mxu0 0.0
        %2315 = vmatprep.subr.mxu0 0.0
        %2316 = vmatpush1.msra.mxu0 0.0
        %2317 = vmatprep.subr.mxu0 0.0
        %2318 = vmatpush1.msra.mxu0 0.0
        %2319 = vmatprep.subr.mxu0 0.0
        %2320 = vmatpush1.msra.mxu0 0.0
        %2321 = vmatprep.subr.mxu0 0.0
        %2322 = vmatpush1.msra.mxu0 0.0
        %2323 = vmatprep.subr.mxu0 0.0
        %2324 = vmatpush1.msra.mxu0 0.0
        %2325 = vmatprep.subr.mxu0 0.0
        %2326 = vmatpush1.msra.mxu0 0.0
        %2327 = vmatprep.subr.mxu0 0.0
        %v2328 = vand.u32 %v2122, 4294901760
        %v2329 = vsub.f32 %v2122, %v2328
        %2330 = vmatpush1.msra.mxu0 %v2329
        %2331 = vmatprep.subr.mxu0 0.0
        %v2332 = vand.u32 %v2116, 4294901760
        %v2333 = vsub.f32 %v2116, %v2332
        %2334 = vmatpush1.msra.mxu0 %v2333
        %2335 = vmatprep.subr.mxu0 0.0
        %2336 = vmatpush2.msra.mxu0 0.0
        %2337 = vmatprep.subr.mxu0 0.0
        %2338 = vmatpush2.msra.mxu0 0.0
        %2339 = vmatprep.subr.mxu0 0.0
        %2340 = vmatpush2.msra.mxu0 0.0
        %2341 = vmatprep.subr.mxu0 0.0
        %2342 = vmatpush2.msra.mxu0 0.0
        %2343 = vmatprep.subr.mxu0 0.0
        %2344 = vmatpush2.msra.mxu0 0.0
        %2345 = vmatprep.subr.mxu0 0.0
        %2346 = vmatpush2.msra.mxu0 0.0
        %2347 = vmatprep.subr.mxu0 0.0
        %2348 = vmatpush2.msra.mxu0 0.0
        %2349 = vmatprep.subr.mxu0 0.0
        %2350 = vmatpush2.msra.mxu0 0.0
        %2351 = vmatprep.subr.mxu0 0.0
        %2352 = vmatpush2.msra.mxu0 0.0
        %2353 = vmatprep.subr.mxu0 0.0
        %2354 = vmatpush2.msra.mxu0 0.0
        %2355 = vmatprep.subr.mxu0 0.0
        %2356 = vmatpush2.msra.mxu0 0.0
        %2357 = vmatprep.subr.mxu0 0.0
        %2358 = vmatpush2.msra.mxu0 0.0
        %2359 = vmatprep.subr.mxu0 0.0
        %2360 = vmatpush2.msra.mxu0 0.0
        %2361 = vmatprep.subr.mxu0 0.0
        %2362 = vmatpush2.msra.mxu0 0.0
        %2363 = vmatprep.subr.mxu0 0.0
        %2364 = vmatpush2.msra.mxu0 0.0
        %2365 = vmatprep.subr.mxu0 0.0
        %2366 = vmatpush2.msra.mxu0 0.0
        %2367 = vmatprep.mubr.f32.mxu0 0.0
        %v2368 = vand.u32 %v922, 4294901760
        %v2369 = vsub.f32 %v922, %v2368
        %2370 = vmatmul.mubr.f32.gmra.mxu0 %v2369
        %v2371 = vpop.f32.mrf.mxu0
        %v2372 = vadd.f32 %v2290, %v2371
        %v2373 = vpop.f32.mrf.mxu0
        %2374 = vmatprep.mubr.f32.mxu0 0.0
        %v2375 = vand.u32 %v925, 4294901760
        %v2376 = vsub.f32 %v925, %v2375
        %2377 = vmatmul.mubr.f32.gmra.mxu0 %v2376
        %v2378 = vpop.f32.mrf.mxu0
        %v2379 = vadd.f32 %v2296, %v2378
        %v2380 = vpop.f32.mrf.mxu0
        %2381 = vdwg.mxu0
        %2382 = vmatprep.subr.mxu0 0.0
        %2383 = vmatpush1.msra.mxu0 0.0
        %2384 = vmatprep.subr.mxu0 0.0
        %2385 = vmatpush1.msra.mxu0 0.0
        %2386 = vmatprep.subr.mxu0 0.0
        %2387 = vmatpush1.msra.mxu0 0.0
        %2388 = vmatprep.subr.mxu0 0.0
        %2389 = vmatpush1.msra.mxu0 0.0
        %2390 = vmatprep.subr.mxu0 0.0
        %2391 = vmatpush1.msra.mxu0 0.0
        %2392 = vmatprep.subr.mxu0 0.0
        %2393 = vmatpush1.msra.mxu0 0.0
        %2394 = vmatprep.subr.mxu0 0.0
        %2395 = vmatpush1.msra.mxu0 0.0
        %2396 = vmatprep.subr.mxu0 0.0
        %2397 = vmatpush1.msra.mxu0 0.0
        %2398 = vmatprep.subr.mxu0 0.0
        %2399 = vmatpush1.msra.mxu0 0.0
        %2400 = vmatprep.subr.mxu0 0.0
        %2401 = vmatpush1.msra.mxu0 0.0
        %2402 = vmatprep.subr.mxu0 0.0
        %2403 = vmatpush1.msra.mxu0 0.0
        %2404 = vmatprep.subr.mxu0 0.0
        %2405 = vmatpush1.msra.mxu0 0.0
        %2406 = vmatprep.subr.mxu0 0.0
        %2407 = vmatpush1.msra.mxu0 0.0
        %2408 = vmatprep.subr.mxu0 0.0
        %2409 = vmatpush1.msra.mxu0 0.0
        %2410 = vmatprep.subr.mxu0 0.0
        %v2411 = vand.u32 %v2122, 4294901760
        %2412 = vmatpush1.msra.mxu0 %v2411
        %2413 = vmatprep.subr.mxu0 0.0
        %v2414 = vand.u32 %v2116, 4294901760
        %2415 = vmatpush1.msra.mxu0 %v2414
        %2416 = vmatprep.subr.mxu0 0.0
        %2417 = vmatpush2.msra.mxu0 0.0
        %2418 = vmatprep.subr.mxu0 0.0
        %2419 = vmatpush2.msra.mxu0 0.0
        %2420 = vmatprep.subr.mxu0 0.0
        %2421 = vmatpush2.msra.mxu0 0.0
        %2422 = vmatprep.subr.mxu0 0.0
        %2423 = vmatpush2.msra.mxu0 0.0
        %2424 = vmatprep.subr.mxu0 0.0
        %2425 = vmatpush2.msra.mxu0 0.0
        %2426 = vmatprep.subr.mxu0 0.0
        %2427 = vmatpush2.msra.mxu0 0.0
        %2428 = vmatprep.subr.mxu0 0.0
        %2429 = vmatpush2.msra.mxu0 0.0
        %2430 = vmatprep.subr.mxu0 0.0
        %2431 = vmatpush2.msra.mxu0 0.0
        %2432 = vmatprep.subr.mxu0 0.0
        %2433 = vmatpush2.msra.mxu0 0.0
        %2434 = vmatprep.subr.mxu0 0.0
        %2435 = vmatpush2.msra.mxu0 0.0
        %2436 = vmatprep.subr.mxu0 0.0
        %2437 = vmatpush2.msra.mxu0 0.0
        %2438 = vmatprep.subr.mxu0 0.0
        %2439 = vmatpush2.msra.mxu0 0.0
        %2440 = vmatprep.subr.mxu0 0.0
        %2441 = vmatpush2.msra.mxu0 0.0
        %2442 = vmatprep.subr.mxu0 0.0
        %2443 = vmatpush2.msra.mxu0 0.0
        %2444 = vmatprep.subr.mxu0 0.0
        %2445 = vmatpush2.msra.mxu0 0.0
        %2446 = vmatprep.subr.mxu0 0.0
        %2447 = vmatpush2.msra.mxu0 0.0
        %2448 = vmatprep.mubr.f32.mxu0 0.0
        %v2449 = vand.u32 %v922, 4294901760
        %v2450 = vsub.f32 %v922, %v2449
        %v2451 = vand.u32 %v2450, 4294901760
        %2452 = vmatmul.mubr.f32.gmra.mxu0 %v2451
        %v2453 = vpop.f32.mrf.mxu0
        %v2454 = vadd.f32 %v2372, %v2453
        %v2455 = vpop.f32.mrf.mxu0
        %2456 = vmatprep.mubr.f32.mxu0 0.0
        %v2457 = vand.u32 %v925, 4294901760
        %v2458 = vsub.f32 %v925, %v2457
        %v2459 = vand.u32 %v2458, 4294901760
        %2460 = vmatmul.mubr.f32.gmra.mxu0 %v2459
        %v2461 = vpop.f32.mrf.mxu0
        %v2462 = vadd.f32 %v2379, %v2461
        %v2463 = vpop.f32.mrf.mxu0
        %2464 = vdwg.mxu0
        %2465 = vmatprep.subr.mxu0 0.0
        %2466 = vmatpush1.msra.mxu0 0.0
        %2467 = vmatprep.subr.mxu0 0.0
        %2468 = vmatpush1.msra.mxu0 0.0
        %2469 = vmatprep.subr.mxu0 0.0
        %2470 = vmatpush1.msra.mxu0 0.0
        %2471 = vmatprep.subr.mxu0 0.0
        %2472 = vmatpush1.msra.mxu0 0.0
        %2473 = vmatprep.subr.mxu0 0.0
        %2474 = vmatpush1.msra.mxu0 0.0
        %2475 = vmatprep.subr.mxu0 0.0
        %2476 = vmatpush1.msra.mxu0 0.0
        %2477 = vmatprep.subr.mxu0 0.0
        %2478 = vmatpush1.msra.mxu0 0.0
        %2479 = vmatprep.subr.mxu0 0.0
        %2480 = vmatpush1.msra.mxu0 0.0
        %2481 = vmatprep.subr.mxu0 0.0
        %2482 = vmatpush1.msra.mxu0 0.0
        %2483 = vmatprep.subr.mxu0 0.0
        %2484 = vmatpush1.msra.mxu0 0.0
        %2485 = vmatprep.subr.mxu0 0.0
        %2486 = vmatpush1.msra.mxu0 0.0
        %2487 = vmatprep.subr.mxu0 0.0
        %2488 = vmatpush1.msra.mxu0 0.0
        %2489 = vmatprep.subr.mxu0 0.0
        %2490 = vmatpush1.msra.mxu0 0.0
        %2491 = vmatprep.subr.mxu0 0.0
        %2492 = vmatpush1.msra.mxu0 0.0
        %2493 = vmatprep.subr.mxu0 0.0
        %v2494 = vand.u32 %v2122, 4294901760
        %v2495 = vsub.f32 %v2122, %v2494
        %v2496 = vand.u32 %v2495, 4294901760
        %2497 = vmatpush1.msra.mxu0 %v2496
        %2498 = vmatprep.subr.mxu0 0.0
        %v2499 = vand.u32 %v2116, 4294901760
        %v2500 = vsub.f32 %v2116, %v2499
        %v2501 = vand.u32 %v2500, 4294901760
        %2502 = vmatpush1.msra.mxu0 %v2501
        %2503 = vmatprep.subr.mxu0 0.0
        %2504 = vmatpush2.msra.mxu0 0.0
        %2505 = vmatprep.subr.mxu0 0.0
        %2506 = vmatpush2.msra.mxu0 0.0
        %2507 = vmatprep.subr.mxu0 0.0
        %2508 = vmatpush2.msra.mxu0 0.0
        %2509 = vmatprep.subr.mxu0 0.0
        %2510 = vmatpush2.msra.mxu0 0.0
        %2511 = vmatprep.subr.mxu0 0.0
        %2512 = vmatpush2.msra.mxu0 0.0
        %2513 = vmatprep.subr.mxu0 0.0
        %2514 = vmatpush2.msra.mxu0 0.0
        %2515 = vmatprep.subr.mxu0 0.0
        %2516 = vmatpush2.msra.mxu0 0.0
        %2517 = vmatprep.subr.mxu0 0.0
        %2518 = vmatpush2.msra.mxu0 0.0
        %2519 = vmatprep.subr.mxu0 0.0
        %2520 = vmatpush2.msra.mxu0 0.0
        %2521 = vmatprep.subr.mxu0 0.0
        %2522 = vmatpush2.msra.mxu0 0.0
        %2523 = vmatprep.subr.mxu0 0.0
        %2524 = vmatpush2.msra.mxu0 0.0
        %2525 = vmatprep.subr.mxu0 0.0
        %2526 = vmatpush2.msra.mxu0 0.0
        %2527 = vmatprep.subr.mxu0 0.0
        %2528 = vmatpush2.msra.mxu0 0.0
        %2529 = vmatprep.subr.mxu0 0.0
        %2530 = vmatpush2.msra.mxu0 0.0
        %2531 = vmatprep.subr.mxu0 0.0
        %2532 = vmatpush2.msra.mxu0 0.0
        %2533 = vmatprep.subr.mxu0 0.0
        %2534 = vmatpush2.msra.mxu0 0.0
        %2535 = vmatprep.mubr.f32.mxu0 0.0
        %v2536 = vand.u32 %v922, 4294901760
        %2537 = vmatmul.mubr.f32.gmra.mxu0 %v2536
        %v2538 = vpop.f32.mrf.mxu0
        %v2539 = vadd.f32 %v2454, %v2538
        %v2540 = vpop.f32.mrf.mxu0
        %2541 = vmatprep.mubr.f32.mxu0 0.0
        %v2542 = vand.u32 %v925, 4294901760
        %2543 = vmatmul.mubr.f32.gmra.mxu0 %v2542
        %v2544 = vpop.f32.mrf.mxu0
        %v2545 = vadd.f32 %v2462, %v2544
        %v2546 = vpop.f32.mrf.mxu0
        %2547 = vdwg.mxu0
        %2548 = vmatprep.subr.mxu0 0.0
        %2549 = vmatpush1.msra.mxu0 0.0
        %2550 = vmatprep.subr.mxu0 0.0
        %2551 = vmatpush1.msra.mxu0 0.0
        %2552 = vmatprep.subr.mxu0 0.0
        %2553 = vmatpush1.msra.mxu0 0.0
        %2554 = vmatprep.subr.mxu0 0.0
        %2555 = vmatpush1.msra.mxu0 0.0
        %2556 = vmatprep.subr.mxu0 0.0
        %2557 = vmatpush1.msra.mxu0 0.0
        %2558 = vmatprep.subr.mxu0 0.0
        %2559 = vmatpush1.msra.mxu0 0.0
        %2560 = vmatprep.subr.mxu0 0.0
        %2561 = vmatpush1.msra.mxu0 0.0
        %2562 = vmatprep.subr.mxu0 0.0
        %2563 = vmatpush1.msra.mxu0 0.0
        %2564 = vmatprep.subr.mxu0 0.0
        %2565 = vmatpush1.msra.mxu0 0.0
        %2566 = vmatprep.subr.mxu0 0.0
        %2567 = vmatpush1.msra.mxu0 0.0
        %2568 = vmatprep.subr.mxu0 0.0
        %2569 = vmatpush1.msra.mxu0 0.0
        %2570 = vmatprep.subr.mxu0 0.0
        %2571 = vmatpush1.msra.mxu0 0.0
        %2572 = vmatprep.subr.mxu0 0.0
        %2573 = vmatpush1.msra.mxu0 0.0
        %2574 = vmatprep.subr.mxu0 0.0
        %2575 = vmatpush1.msra.mxu0 0.0
        %2576 = vmatprep.subr.mxu0 0.0
        %v2577 = vand.u32 %v2122, 4294901760
        %2578 = vmatpush1.msra.mxu0 %v2577
        %2579 = vmatprep.subr.mxu0 0.0
        %v2580 = vand.u32 %v2116, 4294901760
        %2581 = vmatpush1.msra.mxu0 %v2580
        %2582 = vmatprep.subr.mxu0 0.0
        %2583 = vmatpush2.msra.mxu0 0.0
        %2584 = vmatprep.subr.mxu0 0.0
        %2585 = vmatpush2.msra.mxu0 0.0
        %2586 = vmatprep.subr.mxu0 0.0
        %2587 = vmatpush2.msra.mxu0 0.0
        %2588 = vmatprep.subr.mxu0 0.0
        %2589 = vmatpush2.msra.mxu0 0.0
        %2590 = vmatprep.subr.mxu0 0.0
        %2591 = vmatpush2.msra.mxu0 0.0
        %2592 = vmatprep.subr.mxu0 0.0
        %2593 = vmatpush2.msra.mxu0 0.0
        %2594 = vmatprep.subr.mxu0 0.0
        %2595 = vmatpush2.msra.mxu0 0.0
        %2596 = vmatprep.subr.mxu0 0.0
        %2597 = vmatpush2.msra.mxu0 0.0
        %2598 = vmatprep.subr.mxu0 0.0
        %2599 = vmatpush2.msra.mxu0 0.0
        %2600 = vmatprep.subr.mxu0 0.0
        %2601 = vmatpush2.msra.mxu0 0.0
        %2602 = vmatprep.subr.mxu0 0.0
        %2603 = vmatpush2.msra.mxu0 0.0
        %2604 = vmatprep.subr.mxu0 0.0
        %2605 = vmatpush2.msra.mxu0 0.0
        %2606 = vmatprep.subr.mxu0 0.0
        %2607 = vmatpush2.msra.mxu0 0.0
        %2608 = vmatprep.subr.mxu0 0.0
        %2609 = vmatpush2.msra.mxu0 0.0
        %2610 = vmatprep.subr.mxu0 0.0
        %2611 = vmatpush2.msra.mxu0 0.0
        %2612 = vmatprep.subr.mxu0 0.0
        %2613 = vmatpush2.msra.mxu0 0.0
        %2614 = vmatprep.mubr.f32.mxu0 0.0
        %v2615 = vand.u32 %v922, 4294901760
        %2616 = vmatmul.mubr.f32.gmra.mxu0 %v2615
        %v2617 = vpop.f32.mrf.mxu0
        %v2618 = vadd.f32 %v2539, %v2617
        %v2619 = vpop.f32.mrf.mxu0
        %2620 = vmatprep.mubr.f32.mxu0 0.0
        %v2621 = vand.u32 %v925, 4294901760
        %2622 = vmatmul.mubr.f32.gmra.mxu0 %v2621
        %v2623 = vpop.f32.mrf.mxu0
        %v2624 = vadd.f32 %v2545, %v2623
        %v2625 = vpop.f32.mrf.mxu0
        %2626 = vdwg.mxu0
        %v2627 = vmul.f32 %v1429, 0.5
        %v2628 = vmul.f32 %v1430, 0.5
        %v2629 = vadd.f32 %v216, %v2627
        %v2630 = vadd.f32 %v217, %v2628
        %v2631 = vmax.f32 %v2629, 0.0
        %v2632 = vmax.f32 %v2630, 0.0
        %v2633 = vmin.f32 %v2631, 1.0
        %v2634 = vmin.f32 %v2632, 1.0
        %v2635 = vmul.f32 %v2618, %v2633
        %v2636 = vmul.f32 %v2624, %v2634
        %v2637 = vsub.f32 1.0, %v2618
        %v2638 = vsub.f32 1.0, %v2624
        %v2639 = vmul.f32 %v2637, %v216
        %v2640 = vmul.f32 %v2638, %v217
        %v2641 = vadd.f32 %v2635, %v2639
        %v2642 = vadd.f32 %v2636, %v2640
        %2643 = vst [vmem:[%s215] sm:$0xff] %v2641
        %2644 = vst [vmem:[%s215 + $0x8] sm:$0xff] %v2642
        %s2645 = sand.u32 %s95, 1
        %s2646 = scalar_lea.sflag [#allocation4], %s2645
        %s2647 = sand.u32 %s95, 1
        %s2648 = smul.addr %s2647, 16
        %s2649 = scalar_lea.vmem [#allocation8], %s2648
        // Predicated region
        $region45: #{tpu_custom_call.1} parent=31 // pred_check
          %p2650 = pneg %p105
        $region46: #{tpu_custom_call.1} parent=31 // pred_check_branch
          %2652 = sbr.rel (%p2650) target = $region48
        $region47: #{tpu_custom_call.1} parent=31 // pred_region
          %s2654 = ssub.s32 256, 256
          %2655 = vsyncadd %s2646, %s2654
          %s2656 = smul.addr %s19, 2
          %s2657 = smul.addr %s2656, 128
          %s2658 = scalar_lea.hbm %s3, %s2657
          %s2659 = sshll.u32 %s2649, 4
          %s2660 = int_to_ptr.vmem [resolvable:$true] %s2659
          %2665 = dma.vmem_to_hbm [thread:$0]  %s2660, 256, %s2658, %s2646, 128, 128, 8
        $region48: #{tpu_custom_call.1} parent=31 // pred_fallthru
          _
      $region32: #{tpu_custom_call.1} parent=5 // pred_fallthru
        _
      %p2666 = scmp.le.s32.totalorder 2, %s14
      // Predicated region
      $region49: #{tpu_custom_call.1} parent=5 // pred_check
        %p2667 = pneg %p2666
      $region50: #{tpu_custom_call.1} parent=5 // pred_check_branch
        %2669 = sbr.rel (%p2667) target = $region52
      $region51: #{tpu_custom_call.1} parent=5 // pred_region
        %s2670 = ssub.s32 %s14, 2
        // Predicated region
        $region53: #{tpu_custom_call.1} parent=51 // pred_check
          %p2671 = pneg %p111
        $region54: #{tpu_custom_call.1} parent=51 // pred_check_branch
          %2673 = sbr.rel (%p2671) target = $region56
        $region55: #{tpu_custom_call.1} parent=51 // pred_region
          %s2674 = sand.u32 %s96, 1
          %s2675 = scalar_lea.sflag [#allocation4], %s2674
          %s2676 = sand.u32 %s96, 1
          %s2677 = smul.addr %s2676, 16
          %s2678 = scalar_lea.vmem [#allocation8], %s2677
          %2679 = dma.done %s2675, 256
        $region56: #{tpu_custom_call.1} parent=51 // pred_fallthru
          _
      $region52: #{tpu_custom_call.1} parent=5 // pred_fallthru
        _
    $region6: #{tpu_custom_call.1} parent=1 // loop_footer
      %s18 = sadd.s32 1, %s14
    $region7: #{tpu_custom_call.1} parent=1 // loop_footer_branch
      %13 = sbr.rel target = $region3
    $region8: #{tpu_custom_call.1} parent=1 // loop_exit
      _
    %2680 = vsyncpa [#allocation3], 1
    %s2681 = scalar_lea.sflag [#allocation3], 1
    %2682 = vsyncpa %s2681, 1
    %2683 = vsyncpa [#allocation6], 1
    %2684 = vsyncpa [#allocation4], 1
    %s2685 = scalar_lea.sflag [#allocation4], 1
    %2686 = vsyncpa %s2685, 1

</llo_original>
